<compile_context>
chip_gen: v6e
topology: v6e:2x2x1
jax: 0.10.0
libtpu: 0.0.40
codegen_flags: <defaults>
</compile_context>

<pallas_src>
import functools

import jax
import jax.numpy as jnp
from jax.experimental import pallas as pl
from jax.experimental.pallas import tpu as pltpu

EPS = 1e-6
LANES = 128


# ----------------------------------------------------------------------------
# Hardware queries (trace-time, with conservative fallbacks)
# ----------------------------------------------------------------------------
def _vmem_capacity_bytes():
    try:
        v = pltpu.get_tpu_info().vmem_capacity_bytes
        v = int(v)
        if v > 0:
            return v
    except Exception:
        pass
    return 64 * 1024 * 1024  # conservative (v7x per-TC VMEM)


def _detect_num_cores():
    # Number of TensorCores per device (2 on v7x, 1 on v5e/v6e).  A default of
    # 2 is harmless on single-core chips (one extra, fully-masked grid step).
    try:
        info = pltpu.get_tpu_info()
        for attr in ("num_cores", "core_count", "tensorcore_count", "num_tensorcores"):
            v = getattr(info, attr, None)
            if v is not None:
                v = int(v)
                if 1 <= v <= 8:
                    return min(v, 4)
    except Exception:
        pass
    try:
        d = jax.devices()[0]
        for attr in ("num_cores", "core_count"):
            v = getattr(d, attr, None)
            if v is not None:
                v = int(v)
                if 1 <= v <= 8:
                    return min(v, 4)
    except Exception:
        pass
    return 2


# ----------------------------------------------------------------------------
# VMEM budgeting / tile selection
# ----------------------------------------------------------------------------
def _per_row_vmem(D, in_itemsize):
    emb = 2 * 2 * D * in_itemsize      # two embedding inputs, double-buffered
    lbl = 2 * LANES * 4                # (tb,1) f32 label block lane-pads to 128 lanes
    prod = 3 * D * 4                   # f32 elementwise products feeding the MXU
    epi = 5 * LANES * 4                # lane-dense (tb,128) f32 epilogue temporaries
    return emb + lbl + prod + epi


def _fixed_vmem(D):
    return D * LANES * 4 + (1 << 20)   # ones matrix + slack


def _choose_block_b(B, D, in_itemsize, vmem_cap, num_cores):
    """Largest batch tile (multiple of 8) fitting a generation-aware VMEM budget."""
    budget = int(vmem_cap * 0.65)
    tb = (budget - _fixed_vmem(D)) // max(_per_row_vmem(D, in_itemsize), 1)
    tb = min(tb, 32768)                        # generous ceiling (old 2048 cap removed)
    per_core_rows = -(-B // num_cores)         # no point exceeding one core's share
    tb = min(tb, -(-per_core_rows // 8) * 8)
    tb = max(8, (tb // 8) * 8)
    return int(tb)


# ----------------------------------------------------------------------------
# Kernel
# ----------------------------------------------------------------------------
def _contrastive_kernel(x1_ref, x2_ref, lbl_ref, out_ref, *,
                        margin, batch, block_b, tiles_per_core, exact_cover):
    c = pl.program_id(0)                 # core (parallel axis)
    i = pl.program_id(1)                 # batch-tile within this core (arbitrary axis)
    t = c * tiles_per_core + i           # global tile index

    @pl.when(i == 0)
    def _init():
        out_ref[...] = jnp.zeros_like(out_ref)

    x1 = x1_ref[...]                     # (TB, D), native dtype
    x2 = x2_ref[...]
    if x1.dtype != jnp.float32:
        # Upcast in-register: keeps |x|^2 exact and works on v5e (no bf16 VALU).
        x1 = x1.astype(jnp.float32)
        x2 = x2.astype(jnp.float32)

    # VPU: elementwise products only.  The add-trees go to the MXU below.
    prod = x1 * x2
    sq1 = x1 * x1
    sq2 = x2 * x2

    # MXU row-reductions via ones-matmul; output is lane-replicated (TB, 128).
    # HIGHEST precision keeps the f32 reduction exact; the MXU is otherwise idle.
    ones = jnp.ones((prod.shape[1], LANES), dtype=jnp.float32)
    dot = jnp.dot(prod, ones, preferred_element_type=jnp.float32,
                  precision=jax.lax.Precision.HIGHEST)
    n1sq = jnp.dot(sq1, ones, preferred_element_type=jnp.float32,
                   precision=jax.lax.Precision.HIGHEST)
    n2sq = jnp.dot(sq2, ones, preferred_element_type=jnp.float32,
                   precision=jax.lax.Precision.HIGHEST)

    # Lane-dense epilogue on (TB, 128).
    #   cos = dot / max(||x1||*||x2||, eps) == dot * rsqrt(max(n1sq*n2sq, eps^2))
    cos = dot * jax.lax.rsqrt(jnp.maximum(n1sq * n2sq, EPS * EPS))
    hinge = jnp.maximum(margin - cos, 0.0)
    lbl = lbl_ref[...].astype(jnp.float32)                      # (TB, 1), lane-broadcast
    per = (1.0 - lbl) * (cos * cos) + lbl * (hinge * hinge)     # (TB, 128)

    if exact_cover:
        # Grid covers B exactly: no masking on the hot path.
        out_ref[...] += jnp.sum(per)
    else:
        is_full = (t + 1) * block_b <= batch

        @pl.when(is_full)
        def _full():
            out_ref[...] += jnp.sum(per)

        @pl.when(jnp.logical_not(is_full))
        def _partial():
            # Ragged last tile and/or fully-padded core tiles: mask padded rows.
            rows = t * block_b + jax.lax.broadcasted_iota(jnp.int32, per.shape, 0)
            out_ref[...] += jnp.sum(jnp.where(rows < batch, per, 0.0))


# ----------------------------------------------------------------------------
# Wrapper
# ----------------------------------------------------------------------------
def contrastive_loss(output1, output2, label, margin=1.0, block_b=None, num_cores=None):
    """output1/output2: (B, D), label: (B,) in {0, 1}. Returns scalar f32 loss."""
    B, D = output1.shape
    lbl = label.reshape(B, 1)
    if lbl.dtype != jnp.float32:
        lbl = lbl.astype(jnp.float32)

    nc = int(num_cores) if num_cores is not None else _detect_num_cores()
    vmem_cap = _vmem_capacity_bytes()
    itemsize = int(output1.dtype.itemsize)

    tb = int(block_b) if block_b is not None else _choose_block_b(B, D, itemsize, vmem_cap, nc)
    num_tiles = pl.cdiv(B, tb)
    tiles_per_core = pl.cdiv(num_tiles, nc)
    exact_cover = (nc * tiles_per_core * tb == B)

    # VMEM limit from the actual estimated footprint (inputs, label padding,
    # f32 temporaries, ones matrix), clamped to physical capacity.
    need = tb * _per_row_vmem(D, itemsize) + _fixed_vmem(D)
    vmem_limit = int(min(vmem_cap, max(need + (8 << 20), 32 << 20)))

    kernel = functools.partial(
        _contrastive_kernel,
        margin=float(margin), batch=int(B), block_b=int(tb),
        tiles_per_core=int(tiles_per_core), exact_cover=bool(exact_cover))

    # Clamp the global tile index so padded (out-of-range) tiles re-read the
    # last valid tile; their rows are masked out in the kernel.
    def _in_idx(c, i):
        return (jnp.minimum(c * tiles_per_core + i, num_tiles - 1), 0)

    partials = pl.pallas_call(
        kernel,
        out_shape=jax.ShapeDtypeStruct((nc, 1, 1), jnp.float32),
        grid_spec=pltpu.PrefetchScalarGridSpec(
            num_scalar_prefetch=0,
            grid=(nc, tiles_per_core),
            in_specs=[
                pl.BlockSpec((tb, D), _in_idx),   # output1 tile
                pl.BlockSpec((tb, D), _in_idx),   # output2 tile
                pl.BlockSpec((tb, 1), _in_idx),   # label tile
            ],
            # Per-core partial sum; block index constant over the reduction axis,
            # so the block stays resident and acts as the accumulator.
            out_specs=pl.BlockSpec((1, 1, 1), lambda c, i: (c, 0, 0)),
        ),
        compiler_params=pltpu.CompilerParams(
            dimension_semantics=("parallel", "arbitrary"),
            vmem_limit_bytes=vmem_limit,
        ),
    )(output1, output2, lbl)

    # Each row's loss is replicated across 128 lanes -> divide by LANES;
    # size_average=True -> mean over the true batch size.
    return jnp.sum(partials) / (float(LANES) * float(B))


# ----------------------------------------------------------------------------
# Pure-JAX reference
# ----------------------------------------------------------------------------
def _reference(output1, output2, label, margin=1.0):
    o1 = output1.astype(jnp.float32)
    o2 = output2.astype(jnp.float32)
    dot = jnp.sum(o1 * o2, axis=1)
    n1 = jnp.linalg.norm(o1, axis=1)
    n2 = jnp.linalg.norm(o2, axis=1)
    cos = dot / jnp.maximum(n1 * n2, EPS)
    hinge = jnp.maximum(margin - cos, 0.0)
    return jnp.mean((1.0 - label) * cos ** 2 + label * hinge ** 2)


if __name__ == "__main__":
    key = jax.random.PRNGKey(0)
    k1, k2, k3 = jax.random.split(key, 3)

    B, D = 10, 32   # ragged batch (not a multiple of 8) to exercise the mask path
    margin = 1.0

    output1 = jax.random.normal(k1, (B, D), dtype=jnp.float32)
    output2 = jax.random.normal(k2, (B, D), dtype=jnp.float32)
    label = jax.random.bernoulli(k3, 0.5, (B,)).astype(jnp.float32)

    ref = _reference(output1, output2, label, margin=margin)

    # Default (auto) tile / auto core count.
    loss = contrastive_loss(output1, output2, label, margin=margin)
    jax.block_until_ready(loss)
    assert jnp.allclose(loss, ref, rtol=2e-3, atol=1e-4), (loss, ref)

    # Forced tiny tile: multi-tile streaming + ragged last tile + padded core tiles.
    loss_tiled = contrastive_loss(output1, output2, label, margin=margin, block_b=8)
    jax.block_until_ready(loss_tiled)
    assert jnp.allclose(loss_tiled, ref, rtol=2e-3, atol=1e-4), (loss_tiled, ref)

    # bf16 inputs exercise the native-dtype streaming + in-kernel upcast path.
    o1b = output1.astype(jnp.bfloat16)
    o2b = output2.astype(jnp.bfloat16)
    ref_b = _reference(o1b, o2b, label, margin=margin)
    loss_b = contrastive_loss(o1b, o2b, label, margin=margin)
    jax.block_until_ready(loss_b)
    assert jnp.allclose(loss_b, ref_b, rtol=1e-2, atol=1e-3), (loss_b, ref_b)

    print("KERNEL_OK")
</pallas_src>

<mosaic_0001>
module attributes {stable_mosaic.version = 11 : i64} {
  func.func @_contrastive_kernel(%arg0: i32, %arg1: i32, %arg2: memref<8x32xf32, #tpu.memory_space<vmem>>, %arg3: memref<8x32xf32, #tpu.memory_space<vmem>>, %arg4: memref<8x1xf32, #tpu.memory_space<vmem>>, %arg5: memref<1x1x1xf32, #tpu.memory_space<vmem>>) attributes {dimension_semantics = [#tpu.dimension_semantics<parallel>, #tpu.dimension_semantics<arbitrary>], iteration_bounds = array<i64: 2, 1>, scalar_prefetch = 0 : i64, scratch_operands = 0 : i64, tpu.core_type = #tpu.core_type<tc>, window_params = [{transform_indices = @transform_0, window_bounds = array<i64: 8, 32>}, {transform_indices = @transform_1, window_bounds = array<i64: 8, 32>}, {transform_indices = @transform_2, window_bounds = array<i64: 8, 1>}, {transform_indices = @transform_3, window_bounds = array<i64: 1, 1, 1>}]} {
    %c1_i32 = arith.constant 1 : i32
    %0 = arith.muli %arg0, %c1_i32 : i32
    %1 = arith.addi %0, %arg1 : i32
    %c0_i32 = arith.constant 0 : i32
    %2 = arith.cmpi eq, %arg1, %c0_i32 : i32
    %3 = arith.extui %2 : i1 to i32
    %c0_i32_0 = arith.constant 0 : i32
    %4 = arith.cmpi ne, %3, %c0_i32_0 : i32
    scf.if %4 {
      %cst_16 = arith.constant 0.000000e+00 : f32
      %41 = vector.broadcast %cst_16 : f32 to vector<1x1x1xf32>
      %c0_17 = arith.constant 0 : index
      %c0_18 = arith.constant 0 : index
      %c0_19 = arith.constant 0 : index
      %42 = vector.load %arg5[%c0_17, %c0_18, %c0_19] : memref<1x1x1xf32, #tpu.memory_space<vmem>>, vector<1x1x1xf32>
      tpu.vector_store %arg5[%c0_17, %c0_18, %c0_19], %41 {strides = array<i32>} : memref<1x1x1xf32, #tpu.memory_space<vmem>>, vector<1x1x1xf32>,
    } else {
    }
    %c0 = arith.constant 0 : index
    %c0_1 = arith.constant 0 : index
    %5 = vector.load %arg2[%c0, %c0_1] : memref<8x32xf32, #tpu.memory_space<vmem>>, vector<8x32xf32>
    %c0_2 = arith.constant 0 : index
    %c0_3 = arith.constant 0 : index
    %6 = vector.load %arg3[%c0_2, %c0_3] : memref<8x32xf32, #tpu.memory_space<vmem>>, vector<8x32xf32>
    %7 = arith.mulf %5, %6 : vector<8x32xf32>
    %8 = arith.mulf %5, %5 : vector<8x32xf32>
    %9 = arith.mulf %6, %6 : vector<8x32xf32>
    %cst = arith.constant 1.000000e+00 : f32
    %10 = vector.broadcast %cst : f32 to vector<32x128xf32>
    %cst_4 = arith.constant dense<0.000000e+00> : vector<8x128xf32>
    %11 = tpu.matmul %7, %10, %cst_4 {dimension_numbers = #tpu.dot_dimension_numbers<[1], [0], [0], [1], [0, 0, 1, 1], [], []>, precision = #tpu.contract_precision<fp32>} : vector<8x32xf32>, vector<32x128xf32>, vector<8x128xf32> -> vector<8x128xf32>
    %cst_5 = arith.constant dense<0.000000e+00> : vector<8x128xf32>
    %12 = tpu.matmul %8, %10, %cst_5 {dimension_numbers = #tpu.dot_dimension_numbers<[1], [0], [0], [1], [0, 0, 1, 1], [], []>, precision = #tpu.contract_precision<fp32>} : vector<8x32xf32>, vector<32x128xf32>, vector<8x128xf32> -> vector<8x128xf32>
    %cst_6 = arith.constant dense<0.000000e+00> : vector<8x128xf32>
    %13 = tpu.matmul %9, %10, %cst_6 {dimension_numbers = #tpu.dot_dimension_numbers<[1], [0], [0], [1], [0, 0, 1, 1], [], []>, precision = #tpu.contract_precision<fp32>} : vector<8x32xf32>, vector<32x128xf32>, vector<8x128xf32> -> vector<8x128xf32>
    %14 = arith.mulf %12, %13 : vector<8x128xf32>
    %cst_7 = arith.constant 9.99999996E-13 : f32
    %15 = vector.broadcast %cst_7 : f32 to vector<8x128xf32>
    %16 = arith.maximumf %14, %15 : vector<8x128xf32>
    %17 = math.rsqrt %16 : vector<8x128xf32>
    %18 = arith.mulf %11, %17 : vector<8x128xf32>
    %cst_8 = arith.constant 1.000000e+00 : f32
    %19 = vector.broadcast %cst_8 : f32 to vector<8x128xf32>
    %20 = arith.subf %19, %18 : vector<8x128xf32>
    %cst_9 = arith.constant 0.000000e+00 : f32
    %21 = vector.broadcast %cst_9 : f32 to vector<8x128xf32>
    %22 = arith.maximumf %20, %21 : vector<8x128xf32>
    %c0_10 = arith.constant 0 : index
    %c0_11 = arith.constant 0 : index
    %23 = vector.load %arg4[%c0_10, %c0_11] : memref<8x1xf32, #tpu.memory_space<vmem>>, vector<8x1xf32>
    %cst_12 = arith.constant 1.000000e+00 : f32
    %24 = vector.broadcast %cst_12 : f32 to vector<8x1xf32>
    %25 = arith.subf %24, %23 : vector<8x1xf32>
    %26 = arith.mulf %18, %18 : vector<8x128xf32>
    %27 = vector.broadcast %25 : vector<8x1xf32> to vector<8x128xf32>
    %28 = arith.mulf %27, %26 : vector<8x128xf32>
    %29 = arith.mulf %22, %22 : vector<8x128xf32>
    %30 = vector.broadcast %23 : vector<8x1xf32> to vector<8x128xf32>
    %31 = arith.mulf %30, %29 : vector<8x128xf32>
    %32 = arith.addf %28, %31 : vector<8x128xf32>
    %c1_i32_13 = arith.constant 1 : i32
    %33 = arith.addi %1, %c1_i32_13 : i32
    %c8_i32 = arith.constant 8 : i32
    %34 = arith.muli %33, %c8_i32 : i32
    %c10_i32 = arith.constant 10 : i32
    %35 = arith.cmpi sle, %34, %c10_i32 : i32
    %36 = arith.extui %35 : i1 to i32
    %c0_i32_14 = arith.constant 0 : i32
    %37 = arith.cmpi ne, %36, %c0_i32_14 : i32
    scf.if %37 {
      %c0_16 = arith.constant 0 : index
      %c0_17 = arith.constant 0 : index
      %c0_18 = arith.constant 0 : index
      %41 = vector.load %arg5[%c0_16, %c0_17, %c0_18] : memref<1x1x1xf32, #tpu.memory_space<vmem>>, vector<1x1x1xf32>
      %42 = vector.shape_cast %32 : vector<8x128xf32> to vector<1x8x128xf32>
      %cst_19 = arith.constant dense<0.000000e+00> : vector<1xf32>
      %43 = vector.multi_reduction <add>, %42, %cst_19 [1, 2] : vector<1x8x128xf32> to vector<1xf32>
      %44 = vector.shape_cast %43 : vector<1xf32> to vector<1x1x1xf32>
      %45 = vector.extract %44[0, 0, 0] : f32 from vector<1x1x1xf32>
      %46 = vector.broadcast %45 : f32 to vector<1x1x1xf32>
      %47 = arith.addf %41, %46 : vector<1x1x1xf32>
      %c0_20 = arith.constant 0 : index
      %c0_21 = arith.constant 0 : index
      %c0_22 = arith.constant 0 : index
      %48 = vector.load %arg5[%c0_20, %c0_21, %c0_22] : memref<1x1x1xf32, #tpu.memory_space<vmem>>, vector<1x1x1xf32>
      tpu.vector_store %arg5[%c0_20, %c0_21, %c0_22], %47 {strides = array<i32>} : memref<1x1x1xf32, #tpu.memory_space<vmem>>, vector<1x1x1xf32>,
    } else {
    }
    %true = arith.constant true
    %38 = arith.xori %35, %true : i1
    %39 = arith.extui %38 : i1 to i32
    %c0_i32_15 = arith.constant 0 : i32
    %40 = arith.cmpi ne, %39, %c0_i32_15 : i32
    scf.if %40 {
      %c8_i32_16 = arith.constant 8 : i32
      %41 = arith.muli %1, %c8_i32_16 : i32
      %42 = tpu.iota {dimensions = array<i32: 0>} : vector<8x128xi32>
      %43 = vector.broadcast %41 : i32 to vector<8x128xi32>
      %44 = arith.addi %43, %42 : vector<8x128xi32>
      %c0_17 = arith.constant 0 : index
      %c0_18 = arith.constant 0 : index
      %c0_19 = arith.constant 0 : index
      %45 = vector.load %arg5[%c0_17, %c0_18, %c0_19] : memref<1x1x1xf32, #tpu.memory_space<vmem>>, vector<1x1x1xf32>
      %c10_i32_20 = arith.constant 10 : i32
      %46 = vector.broadcast %c10_i32_20 : i32 to vector<8x128xi32>
      %47 = arith.cmpi slt, %44, %46 : vector<8x128xi32>
      %cst_21 = arith.constant 0.000000e+00 : f32
      %48 = vector.broadcast %cst_21 : f32 to vector<8x128xf32>
      %49 = arith.select %47, %32, %48 : vector<8x128xi1>, vector<8x128xf32>
      %50 = vector.shape_cast %49 : vector<8x128xf32> to vector<1x8x128xf32>
      %cst_22 = arith.constant dense<0.000000e+00> : vector<1xf32>
      %51 = vector.multi_reduction <add>, %50, %cst_22 [1, 2] : vector<1x8x128xf32> to vector<1xf32>
      %52 = vector.shape_cast %51 : vector<1xf32> to vector<1x1x1xf32>
      %53 = vector.extract %52[0, 0, 0] : f32 from vector<1x1x1xf32>
      %54 = vector.broadcast %53 : f32 to vector<1x1x1xf32>
      %55 = arith.addf %45, %54 : vector<1x1x1xf32>
      %c0_23 = arith.constant 0 : index
      %c0_24 = arith.constant 0 : index
      %c0_25 = arith.constant 0 : index
      %56 = vector.load %arg5[%c0_23, %c0_24, %c0_25] : memref<1x1x1xf32, #tpu.memory_space<vmem>>, vector<1x1x1xf32>
      tpu.vector_store %arg5[%c0_23, %c0_24, %c0_25], %55 {strides = array<i32>} : memref<1x1x1xf32, #tpu.memory_space<vmem>>, vector<1x1x1xf32>,
    } else {
    }
    return
  }
  func.func @transform_0(%arg0: i32, %arg1: i32) -> (i32, i32) {
    %c1_i32 = arith.constant 1 : i32
    %0 = arith.muli %arg0, %c1_i32 : i32
    %1 = arith.addi %0, %arg1 : i32
    %c1_i32_0 = arith.constant 1 : i32
    %2 = arith.minsi %1, %c1_i32_0 : i32
    %c0_i32 = arith.constant 0 : i32
    %c0_i32_1 = arith.constant 0 : i32
    return %2, %c0_i32 : i32, i32
  }
  func.func @transform_1(%arg0: i32, %arg1: i32) -> (i32, i32) {
    %c1_i32 = arith.constant 1 : i32
    %0 = arith.muli %arg0, %c1_i32 : i32
    %1 = arith.addi %0, %arg1 : i32
    %c1_i32_0 = arith.constant 1 : i32
    %2 = arith.minsi %1, %c1_i32_0 : i32
    %c0_i32 = arith.constant 0 : i32
    %c0_i32_1 = arith.constant 0 : i32
    return %2, %c0_i32 : i32, i32
  }
  func.func @transform_2(%arg0: i32, %arg1: i32) -> (i32, i32) {
    %c1_i32 = arith.constant 1 : i32
    %0 = arith.muli %arg0, %c1_i32 : i32
    %1 = arith.addi %0, %arg1 : i32
    %c1_i32_0 = arith.constant 1 : i32
    %2 = arith.minsi %1, %c1_i32_0 : i32
    %c0_i32 = arith.constant 0 : i32
    %c0_i32_1 = arith.constant 0 : i32
    return %2, %c0_i32 : i32, i32
  }
  func.func @transform_3(%arg0: i32, %arg1: i32) -> (i32, i32, i32) {
    %c0_i32 = arith.constant 0 : i32
    %c0_i32_0 = arith.constant 0 : i32
    %c0_i32_1 = arith.constant 0 : i32
    return %arg0, %c0_i32, %c0_i32_0 : i32, i32, i32
  }
}

</mosaic_0001>

<llo_original>
// kernel: tpu_custom_call.1
$region0: #{tpu_custom_call.1}
  #allocation0 [shape = 'u32[]', space=smem, size = 0x4, offset = 0x4, fixed_abs, tag = 'smem constant byte address 0x4 - core index']
  #allocation1 [shape = 'u32[144,128]{1,0:T(1,128)}', space=vmem, size = 0x12000, scoped, tag = 'internal scratch']
  %s0 = inlined_call_operand.vmem [shape: f32[10,32], index: 0, kind: input, shape index: {}]
  %s1 = inlined_call_operand.hbm [shape: f32[10,32], index: 1, kind: input, shape index: {}]
  %s2 = inlined_call_operand.vmem [shape: f32[10,1], index: 2, kind: input, shape index: {}]
  %s3 = inlined_call_operand.vmem [shape: f32[2,1,1], index: 3, kind: output, shape index: {}]
  %s4 = sld [smem:[#allocation0]]
  $region61: #{tpu_custom_call.1} parent=0
    _
  %s6 = ssub.s32 1, %s4
  %s7 = scalar_select 0, %s6, %s4
  $region1: #{tpu_custom_call.1} parent=0
    #allocation2 [shape = 'u8[8192]{0}', space=vmem, size = 0x2000, scoped, tag = 'input window, operand 1']
    #allocation3 [shape = 's32[2]{0}', space=sflag, size = 0x8, scoped, tag = 'scoped memory for tpu_custom_call.1']
    %8 = vsyncpa [#allocation3], 0
    %s9 = scalar_lea.sflag [#allocation3], 1
    %10 = vsyncpa %s9, 0
    loop: start=0, step=1, limit=4
    $region2: #{tpu_custom_call.1} parent=1 // loop_pre_header
      _
    $region3: #{tpu_custom_call.1} parent=1 // loop_header
      %s12 = sphi 0, %s16
      %p13 = scmp.ge.s32.totalorder %s12, 4
      %s19 = sphi 0, %s31
      %s20 = sphi 0, %s27
      %s21 = sphi 0, %s19
      %s22 = sphi 0, %s20
      %s23 = sphi 0, %s21
      %s24 = sphi 0, %s22
      %s40 = sphi 0, %s42
      %s43 = sphi 0, %s40
      %s44 = sphi 0, %s43
      %s60 = sphi 0, %s44
      %s72 = sphi 0, %s74
      %s75 = sphi 0, %s72
      %s76 = sphi 0, %s75
      %s92 = sphi 0, %s76
      %s104 = sphi 0, %s106
      %s107 = sphi 0, %s104
      %s108 = sphi 0, %s107
      %s124 = sphi 0, %s108
      %s130 = sphi 0, %s132
      %s133 = sphi 0, %s130
      %s134 = sphi 0, %s133
      %s150 = sphi 0, %s134
    $region4: #{tpu_custom_call.1} parent=1 // loop_header_branch
      %15 = sbr.rel (%p13) target = $region8
    $region5: #{tpu_custom_call.1} parent=1 // loop_body
      %s17 = ssub.s32 %s12, 1
      %s18 = ssub.s32 %s12, 2
      %s25 = sadd.s32 1, %s20
      %p26 = scmp.ge.s32.totalorder %s25, 1
      %s27 = scalar_select %p26, 0, %s25
      %s28 = sadd.s32 1, %s19
      %s29 = scalar_select %p26, %s28, %s19
      %p30 = scmp.ge.s32.totalorder %s29, 2
      %s31 = scalar_select %p30, 0, %s29
      %s32 = sadd.s32 %s19, %s20
      %p33 = scmp.lt.s32.totalorder %s32, 1
      %s34 = scalar_select %p33, %s32, 1
      %s35 = sadd.s32 %s31, %s27
      %p36 = scmp.lt.s32.totalorder %s35, 1
      %s37 = scalar_select %p36, %s35, 1
      %s38 = ssub.s32 %s34, %s37
      %p39 = scmp.eq.s32.totalorder %s38, 0
      %s41 = sadd.s32 %s40, 1
      %s42 = scalar_select %p39, %s40, %s41
      %p45 = pneg %p39
      %p46 = scmp.eq.s32.totalorder %s12, 1
      %p47 = por %p45, %p46
      %p48 = scmp.ne.s32.totalorder %s40, %s43
      %p49 = scmp.eq.s32.totalorder %s12, 0
      %p50 = por %p48, %p49
      %p51 = scmp.ne.s32.totalorder %s40, %s43
      %p52 = scmp.eq.s32.totalorder %s17, 1
      %p53 = por %p51, %p52
      %p54 = scmp.ne.s32.totalorder %s43, %s44
      %p55 = scmp.eq.s32.totalorder %s17, 0
      %p56 = por %p54, %p55
      %p57 = scmp.ne.s32.totalorder %s43, %s44
      %p58 = scmp.eq.s32.totalorder %s18, 1
      %p59 = por %p57, %p58
      %p61 = scmp.ne.s32.totalorder %s44, %s60
      %p62 = scmp.eq.s32.totalorder %s18, 0
      %p63 = por %p61, %p62
      %s64 = sadd.s32 %s19, %s20
      %p65 = scmp.lt.s32.totalorder %s64, 1
      %s66 = scalar_select %p65, %s64, 1
      %s67 = sadd.s32 %s31, %s27
      %p68 = scmp.lt.s32.totalorder %s67, 1
      %s69 = scalar_select %p68, %s67, 1
      %s70 = ssub.s32 %s66, %s69
      %p71 = scmp.eq.s32.totalorder %s70, 0
      %s73 = sadd.s32 %s72, 1
      %s74 = scalar_select %p71, %s72, %s73
      %p77 = pneg %p71
      %p78 = scmp.eq.s32.totalorder %s12, 1
      %p79 = por %p77, %p78
      %p80 = scmp.ne.s32.totalorder %s72, %s75
      %p81 = scmp.eq.s32.totalorder %s12, 0
      %p82 = por %p80, %p81
      %p83 = scmp.ne.s32.totalorder %s72, %s75
      %p84 = scmp.eq.s32.totalorder %s17, 1
      %p85 = por %p83, %p84
      %p86 = scmp.ne.s32.totalorder %s75, %s76
      %p87 = scmp.eq.s32.totalorder %s17, 0
      %p88 = por %p86, %p87
      %p89 = scmp.ne.s32.totalorder %s75, %s76
      %p90 = scmp.eq.s32.totalorder %s18, 1
      %p91 = por %p89, %p90
      %p93 = scmp.ne.s32.totalorder %s76, %s92
      %p94 = scmp.eq.s32.totalorder %s18, 0
      %p95 = por %p93, %p94
      %s96 = sadd.s32 %s19, %s20
      %p97 = scmp.lt.s32.totalorder %s96, 1
      %s98 = scalar_select %p97, %s96, 1
      %s99 = sadd.s32 %s31, %s27
      %p100 = scmp.lt.s32.totalorder %s99, 1
      %s101 = scalar_select %p100, %s99, 1
      %s102 = ssub.s32 %s98, %s101
      %p103 = scmp.eq.s32.totalorder %s102, 0
      %s105 = sadd.s32 %s104, 1
      %s106 = scalar_select %p103, %s104, %s105
      %p109 = pneg %p103
      %p110 = scmp.eq.s32.totalorder %s12, 1
      %p111 = por %p109, %p110
      %p112 = scmp.ne.s32.totalorder %s104, %s107
      %p113 = scmp.eq.s32.totalorder %s12, 0
      %p114 = por %p112, %p113
      %p115 = scmp.ne.s32.totalorder %s104, %s107
      %p116 = scmp.eq.s32.totalorder %s17, 1
      %p117 = por %p115, %p116
      %p118 = scmp.ne.s32.totalorder %s107, %s108
      %p119 = scmp.eq.s32.totalorder %s17, 0
      %p120 = por %p118, %p119
      %p121 = scmp.ne.s32.totalorder %s107, %s108
      %p122 = scmp.eq.s32.totalorder %s18, 1
      %p123 = por %p121, %p122
      %p125 = scmp.ne.s32.totalorder %s108, %s124
      %p126 = scmp.eq.s32.totalorder %s18, 0
      %p127 = por %p125, %p126
      %s128 = ssub.s32 %s19, %s31
      %p129 = scmp.eq.s32.totalorder %s128, 0
      %s131 = sadd.s32 %s130, 1
      %s132 = scalar_select %p129, %s130, %s131
      %p135 = pneg %p129
      %p136 = scmp.eq.s32.totalorder %s12, 1
      %p137 = por %p135, %p136
      %p138 = scmp.ne.s32.totalorder %s130, %s133
      %p139 = scmp.eq.s32.totalorder %s12, 0
      %p140 = por %p138, %p139
      %p141 = scmp.ne.s32.totalorder %s130, %s133
      %p142 = scmp.eq.s32.totalorder %s17, 1
      %p143 = por %p141, %p142
      %p144 = scmp.ne.s32.totalorder %s133, %s134
      %p145 = scmp.eq.s32.totalorder %s17, 0
      %p146 = por %p144, %p145
      %p147 = scmp.ne.s32.totalorder %s133, %s134
      %p148 = scmp.eq.s32.totalorder %s18, 1
      %p149 = por %p147, %p148
      %p151 = scmp.ne.s32.totalorder %s134, %s150
      %p152 = scmp.eq.s32.totalorder %s18, 0
      %p153 = por %p151, %p152
      %p154 = scmp.le.s32.totalorder 1, %s12
      %p155 = scmp.lt.s32.totalorder %s12, 3
      %p156 = pnand %p154, %p155
      %p157 = pneg %p156
      // Predicated region
      $region9: #{tpu_custom_call.1} parent=5 // pred_check
        _
      $region10: #{tpu_custom_call.1} parent=5 // pred_check_branch
        %159 = sbr.rel (%p156) target = $region12
      $region11: #{tpu_custom_call.1} parent=5 // pred_region
        %s160 = ssub.s32 %s12, 1
      $region12: #{tpu_custom_call.1} parent=5 // pred_fallthru
        _
      %p161 = scmp.lt.s32.totalorder %s12, 2
      // Predicated region
      $region13: #{tpu_custom_call.1} parent=5 // pred_check
        %p162 = pneg %p161
      $region14: #{tpu_custom_call.1} parent=5 // pred_check_branch
        %164 = sbr.rel (%p162) target = $region16
      $region15: #{tpu_custom_call.1} parent=5 // pred_region
        // Predicated region
        $region17: #{tpu_custom_call.1} parent=15 // pred_check
          %p165 = pneg %p50
        $region18: #{tpu_custom_call.1} parent=15 // pred_check_branch
          %167 = sbr.rel (%p165) target = $region20
        $region19: #{tpu_custom_call.1} parent=15 // pred_region
          %s168 = sadd.s32 %s19, %s20
          %p169 = scmp.lt.s32.totalorder %s168, 1
          %s170 = scalar_select %p169, %s168, 1
          %p171 = scmp.lt.s32.totalorder %s170, 1
          %s172 = scalar_select %p171, %s170, 1
          %s173 = smul.addr %s172, 8
          %s174 = scalar_lea.vmem %s0, %s173
          %s175 = sadd.s32 %s19, %s20
          %p176 = scmp.lt.s32.totalorder %s175, 1
          %s177 = scalar_select %p176, %s175, 1
        $region20: #{tpu_custom_call.1} parent=15 // pred_fallthru
          _
        // Predicated region
        $region21: #{tpu_custom_call.1} parent=15 // pred_check
          %p178 = pneg %p82
        $region22: #{tpu_custom_call.1} parent=15 // pred_check_branch
          %180 = sbr.rel (%p178) target = $region24
        $region23: #{tpu_custom_call.1} parent=15 // pred_region
          %s181 = sand.u32 %s72, 1
          %s182 = scalar_lea.sflag [#allocation3], %s181
          %s183 = sand.u32 %s72, 1
          %s184 = smul.addr %s183, 8
          %s185 = scalar_lea.vmem [#allocation2], %s184
          %s186 = sadd.s32 %s19, %s20
          %p187 = scmp.lt.s32.totalorder %s186, 1
          %s188 = scalar_select %p187, %s186, 1
          %s190 = ssub.s32 128, 128
          %191 = vsyncadd %s182, %s190
          %s192 = smul.addr %s188, 128
          %s193 = scalar_lea.hbm %s1, %s192
          %s195 = sshll.u32 %s185, 4
          %s196 = int_to_ptr.vmem [resolvable:$true] %s195
          %198 = dma.hbm_to_vmem [thread:$0]  %s193, 128, %s196, %s182
        $region24: #{tpu_custom_call.1} parent=15 // pred_fallthru
          _
        // Predicated region
        $region25: #{tpu_custom_call.1} parent=15 // pred_check
          %p199 = pneg %p114
        $region26: #{tpu_custom_call.1} parent=15 // pred_check_branch
          %201 = sbr.rel (%p199) target = $region28
        $region27: #{tpu_custom_call.1} parent=15 // pred_region
          %s202 = sadd.s32 %s19, %s20
          %p203 = scmp.lt.s32.totalorder %s202, 1
          %s204 = scalar_select %p203, %s202, 1
          %p205 = scmp.lt.s32.totalorder %s204, 1
          %s206 = scalar_select %p205, %s204, 1
          %s207 = smul.addr %s206, 8
          %s208 = scalar_lea.vmem %s2, %s207
          %s209 = sadd.s32 %s19, %s20
          %p210 = scmp.lt.s32.totalorder %s209, 1
          %s211 = scalar_select %p210, %s209, 1
        $region28: #{tpu_custom_call.1} parent=15 // pred_fallthru
          _
      $region16: #{tpu_custom_call.1} parent=5 // pred_fallthru
        _
      %p212 = scmp.le.s32.totalorder 1, %s12
      %p213 = scmp.lt.s32.totalorder %s12, 3
      %p214 = pnand %p212, %p213
      %p215 = pneg %p214
      // Predicated region
      $region29: #{tpu_custom_call.1} parent=5 // pred_check
        _
      $region30: #{tpu_custom_call.1} parent=5 // pred_check_branch
        %217 = sbr.rel (%p214) target = $region32
      $region31: #{tpu_custom_call.1} parent=5 // pred_region
        %s218 = ssub.s32 %s12, 1
        %s219 = sand.u32 %s75, 1
        %s220 = scalar_lea.sflag [#allocation3], %s219
        %s221 = sand.u32 %s75, 1
        %s222 = smul.addr %s221, 8
        %s223 = scalar_lea.vmem [#allocation2], %s222
        // Predicated region
        $region33: #{tpu_custom_call.1} parent=31 // pred_check
          %p224 = pneg %p88
        $region34: #{tpu_custom_call.1} parent=31 // pred_check_branch
          %226 = sbr.rel (%p224) target = $region36
        $region35: #{tpu_custom_call.1} parent=31 // pred_region
          %227 = dma.done %s220, 128
        $region36: #{tpu_custom_call.1} parent=31 // pred_fallthru
          _
        %s228 = sadd.s32 %s21, %s22
        %p229 = scmp.lt.s32.totalorder %s228, 1
        %s230 = scalar_select %p229, %s228, 1
        %p231 = scmp.lt.s32.totalorder %s230, 1
        %s232 = scalar_select %p231, %s230, 1
        %s233 = smul.addr %s232, 8
        %s234 = scalar_lea.vmem %s0, %s233
        %p235 = pneg %p56
        %p236 = pneg %p53
        %s237 = sand.u32 %s75, 1
        %s238 = scalar_lea.sflag [#allocation3], %s237
        %s239 = sand.u32 %s75, 1
        %s240 = smul.addr %s239, 8
        %s241 = scalar_lea.vmem [#allocation2], %s240
        %p242 = pneg %p88
        %p243 = pneg %p85
        %s244 = sadd.s32 %s21, %s22
        %p245 = scmp.lt.s32.totalorder %s244, 1
        %s246 = scalar_select %p245, %s244, 1
        %p247 = scmp.lt.s32.totalorder %s246, 1
        %s248 = scalar_select %p247, %s246, 1
        %s249 = smul.addr %s248, 8
        %s250 = scalar_lea.vmem %s2, %s249
        %p251 = pneg %p120
        %p252 = pneg %p117
        %p253 = pneg %p146
        %p254 = pneg %p143
        %p255 = scmp.lt.s32.totalorder %s21, 1
        %s256 = scalar_select %p255, %s21, 1
        %s257 = scalar_lea.vmem %s3, %s256
        %s258 = sadd.s32 %s21, %s22
        %p259 = scmp.lt.s32.totalorder %s258, 1
        %s260 = scalar_select %p259, %s258, 1
        %p261 = scmp.lt.s32.totalorder %s260, 1
        %s262 = scalar_select %p261, %s260, 1
        %s263 = smul.addr %s262, 8
        %s264 = scalar_lea.vmem %s0, %s263
        %s265 = sadd.s32 %s21, %s22
        %p266 = scmp.lt.s32.totalorder %s265, 1
        %s267 = scalar_select %p266, %s265, 1
        %s268 = sadd.s32 %s21, %s22
        %p269 = scmp.lt.s32.totalorder %s268, 1
        %s270 = scalar_select %p269, %s268, 1
        %s271 = sadd.s32 %s21, %s22
        %p272 = scmp.lt.s32.totalorder %s271, 1
        %s273 = scalar_select %p272, %s271, 1
        %p274 = scmp.lt.s32.totalorder %s273, 1
        %s275 = scalar_select %p274, %s273, 1
        %s276 = smul.addr %s275, 8
        %s277 = scalar_lea.vmem %s2, %s276
        %s278 = sadd.s32 %s21, %s22
        %p279 = scmp.lt.s32.totalorder %s278, 1
        %s280 = scalar_select %p279, %s278, 1
        %p281 = scmp.lt.s32.totalorder %s21, 1
        %s282 = scalar_select %p281, %s21, 1
        %s283 = scalar_lea.vmem %s3, %s282
        %s284 = sadd.s32 %s21, %s22
        %p285 = scmp.eq.s32.totalorder %s22, 0
        // Predicated region
        $region37: #{tpu_custom_call.1} parent=31 // pred_check
          %p286 = pneg %p285
        $region38: #{tpu_custom_call.1} parent=31 // pred_check_branch
          %288 = sbr.rel (%p286) target = $region40
        $region39: #{tpu_custom_call.1} parent=31 // pred_region
          %vm289 = vcmask 0
          %290 = vst.msk [vmem:[%s283] sm:$0x1] %vm289, 0.0
        $region40: #{tpu_custom_call.1} parent=31 // pred_fallthru
          _
        %v291 = vld [vmem:[%s264] sm:$0xff]
        %v292 = vld [vmem:[%s223] sm:$0xff]
        %v293 = vmul.f32 %v291, %v292
        %v294 = vmul.f32 %v291, %v291
        %v295 = vmul.f32 %v292, %v292
        %vm296 = vcmask 261120
        %v298 = vsel %vm296, %v293, 0
        %300 = vmatprep.subr.mxu0 0.0
        %301 = vmatpush1.msra.mxu0 0.0
        %302 = vmatprep.subr.mxu0 0.0
        %303 = vmatpush1.msra.mxu0 0.0
        %304 = vmatprep.subr.mxu0 0.0
        %305 = vmatpush1.msra.mxu0 0.0
        %306 = vmatprep.subr.mxu0 0.0
        %307 = vmatpush1.msra.mxu0 0.0
        %308 = vmatprep.subr.mxu0 0.0
        %309 = vmatpush1.msra.mxu0 0.0
        %310 = vmatprep.subr.mxu0 0.0
        %311 = vmatpush1.msra.mxu0 0.0
        %312 = vmatprep.subr.mxu0 0.0
        %313 = vmatpush1.msra.mxu0 0.0
        %314 = vmatprep.subr.mxu0 0.0
        %315 = vmatpush1.msra.mxu0 0.0
        %316 = vmatprep.subr.mxu0 0.0
        %317 = vmatpush1.msra.mxu0 0.0
        %318 = vmatprep.subr.mxu0 0.0
        %319 = vmatpush1.msra.mxu0 0.0
        %320 = vmatprep.subr.mxu0 0.0
        %321 = vmatpush1.msra.mxu0 0.0
        %322 = vmatprep.subr.mxu0 0.0
        %323 = vmatpush1.msra.mxu0 0.0
        %324 = vmatprep.subr.mxu0 0.0
        %325 = vmatpush1.msra.mxu0 1.0
        %326 = vmatprep.subr.mxu0 0.0
        %327 = vmatpush1.msra.mxu0 1.0
        %328 = vmatprep.subr.mxu0 0.0
        %329 = vmatpush1.msra.mxu0 1.0
        %330 = vmatprep.subr.mxu0 0.0
        %331 = vmatpush1.msra.mxu0 1.0
        %332 = vmatprep.subr.mxu0 0.0
        %333 = vmatpush2.msra.mxu0 0.0
        %334 = vmatprep.subr.mxu0 0.0
        %335 = vmatpush2.msra.mxu0 0.0
        %336 = vmatprep.subr.mxu0 0.0
        %337 = vmatpush2.msra.mxu0 0.0
        %338 = vmatprep.subr.mxu0 0.0
        %339 = vmatpush2.msra.mxu0 0.0
        %340 = vmatprep.subr.mxu0 0.0
        %341 = vmatpush2.msra.mxu0 0.0
        %342 = vmatprep.subr.mxu0 0.0
        %343 = vmatpush2.msra.mxu0 0.0
        %344 = vmatprep.subr.mxu0 0.0
        %345 = vmatpush2.msra.mxu0 0.0
        %346 = vmatprep.subr.mxu0 0.0
        %347 = vmatpush2.msra.mxu0 0.0
        %348 = vmatprep.subr.mxu0 0.0
        %349 = vmatpush2.msra.mxu0 0.0
        %350 = vmatprep.subr.mxu0 0.0
        %351 = vmatpush2.msra.mxu0 0.0
        %352 = vmatprep.subr.mxu0 0.0
        %353 = vmatpush2.msra.mxu0 0.0
        %354 = vmatprep.subr.mxu0 0.0
        %355 = vmatpush2.msra.mxu0 0.0
        %356 = vmatprep.subr.mxu0 0.0
        %357 = vmatpush2.msra.mxu0 0.0
        %358 = vmatprep.subr.mxu0 0.0
        %359 = vmatpush2.msra.mxu0 0.0
        %360 = vmatprep.subr.mxu0 0.0
        %361 = vmatpush2.msra.mxu0 0.0
        %362 = vmatprep.subr.mxu0 0.0
        %363 = vmatpush2.msra.mxu0 0.0
        %364 = vmatprep.mubr.f32.mxu0 0.0
        %v365 = vand.u32 %v298, 4294901760
        %v366 = vsub.f32 %v298, %v365
        %v367 = vand.u32 %v366, 4294901760
        %v368 = vsub.f32 %v366, %v367
        %v369 = vand.u32 %v368, 4294901760
        %370 = vmatmul.mubr.f32.gmra.mxu0 %v369
        %v371 = vpop.f32.mrf.mxu0
        %v372 = vadd.f32 0.0, %v371
        %v373 = vpop.f32.mrf.mxu0
        %374 = vdwg.mxu0
        %375 = vmatprep.subr.mxu0 0.0
        %376 = vmatpush1.msra.mxu0 0.0
        %377 = vmatprep.subr.mxu0 0.0
        %378 = vmatpush1.msra.mxu0 0.0
        %379 = vmatprep.subr.mxu0 0.0
        %380 = vmatpush1.msra.mxu0 0.0
        %381 = vmatprep.subr.mxu0 0.0
        %382 = vmatpush1.msra.mxu0 0.0
        %383 = vmatprep.subr.mxu0 0.0
        %384 = vmatpush1.msra.mxu0 0.0
        %385 = vmatprep.subr.mxu0 0.0
        %386 = vmatpush1.msra.mxu0 0.0
        %387 = vmatprep.subr.mxu0 0.0
        %388 = vmatpush1.msra.mxu0 0.0
        %389 = vmatprep.subr.mxu0 0.0
        %390 = vmatpush1.msra.mxu0 0.0
        %391 = vmatprep.subr.mxu0 0.0
        %392 = vmatpush1.msra.mxu0 0.0
        %393 = vmatprep.subr.mxu0 0.0
        %394 = vmatpush1.msra.mxu0 0.0
        %395 = vmatprep.subr.mxu0 0.0
        %396 = vmatpush1.msra.mxu0 0.0
        %397 = vmatprep.subr.mxu0 0.0
        %398 = vmatpush1.msra.mxu0 0.0
        %399 = vmatprep.subr.mxu0 0.0
        %400 = vmatpush1.msra.mxu0 0.0
        %401 = vmatprep.subr.mxu0 0.0
        %402 = vmatpush1.msra.mxu0 0.0
        %403 = vmatprep.subr.mxu0 0.0
        %404 = vmatpush1.msra.mxu0 0.0
        %405 = vmatprep.subr.mxu0 0.0
        %406 = vmatpush1.msra.mxu0 0.0
        %407 = vmatprep.subr.mxu0 0.0
        %408 = vmatpush2.msra.mxu0 0.0
        %409 = vmatprep.subr.mxu0 0.0
        %410 = vmatpush2.msra.mxu0 0.0
        %411 = vmatprep.subr.mxu0 0.0
        %412 = vmatpush2.msra.mxu0 0.0
        %413 = vmatprep.subr.mxu0 0.0
        %414 = vmatpush2.msra.mxu0 0.0
        %415 = vmatprep.subr.mxu0 0.0
        %416 = vmatpush2.msra.mxu0 0.0
        %417 = vmatprep.subr.mxu0 0.0
        %418 = vmatpush2.msra.mxu0 0.0
        %419 = vmatprep.subr.mxu0 0.0
        %420 = vmatpush2.msra.mxu0 0.0
        %421 = vmatprep.subr.mxu0 0.0
        %422 = vmatpush2.msra.mxu0 0.0
        %423 = vmatprep.subr.mxu0 0.0
        %424 = vmatpush2.msra.mxu0 0.0
        %425 = vmatprep.subr.mxu0 0.0
        %426 = vmatpush2.msra.mxu0 0.0
        %427 = vmatprep.subr.mxu0 0.0
        %428 = vmatpush2.msra.mxu0 0.0
        %429 = vmatprep.subr.mxu0 0.0
        %430 = vmatpush2.msra.mxu0 0.0
        %431 = vmatprep.subr.mxu0 0.0
        %432 = vmatpush2.msra.mxu0 0.0
        %433 = vmatprep.subr.mxu0 0.0
        %434 = vmatpush2.msra.mxu0 0.0
        %435 = vmatprep.subr.mxu0 0.0
        %436 = vmatpush2.msra.mxu0 0.0
        %437 = vmatprep.subr.mxu0 0.0
        %438 = vmatpush2.msra.mxu0 0.0
        %439 = vmatprep.mubr.f32.mxu0 0.0
        %v440 = vand.u32 %v298, 4294901760
        %441 = vmatmul.mubr.f32.gmra.mxu0 %v440
        %v442 = vpop.f32.mrf.mxu0
        %v443 = vadd.f32 %v372, %v442
        %v444 = vpop.f32.mrf.mxu0
        %445 = vdwg.mxu0
        %446 = vmatprep.subr.mxu0 0.0
        %447 = vmatpush1.msra.mxu0 0.0
        %448 = vmatprep.subr.mxu0 0.0
        %449 = vmatpush1.msra.mxu0 0.0
        %450 = vmatprep.subr.mxu0 0.0
        %451 = vmatpush1.msra.mxu0 0.0
        %452 = vmatprep.subr.mxu0 0.0
        %453 = vmatpush1.msra.mxu0 0.0
        %454 = vmatprep.subr.mxu0 0.0
        %455 = vmatpush1.msra.mxu0 0.0
        %456 = vmatprep.subr.mxu0 0.0
        %457 = vmatpush1.msra.mxu0 0.0
        %458 = vmatprep.subr.mxu0 0.0
        %459 = vmatpush1.msra.mxu0 0.0
        %460 = vmatprep.subr.mxu0 0.0
        %461 = vmatpush1.msra.mxu0 0.0
        %462 = vmatprep.subr.mxu0 0.0
        %463 = vmatpush1.msra.mxu0 0.0
        %464 = vmatprep.subr.mxu0 0.0
        %465 = vmatpush1.msra.mxu0 0.0
        %466 = vmatprep.subr.mxu0 0.0
        %467 = vmatpush1.msra.mxu0 0.0
        %468 = vmatprep.subr.mxu0 0.0
        %469 = vmatpush1.msra.mxu0 0.0
        %470 = vmatprep.subr.mxu0 0.0
        %471 = vmatpush1.msra.mxu0 0.0
        %472 = vmatprep.subr.mxu0 0.0
        %473 = vmatpush1.msra.mxu0 0.0
        %474 = vmatprep.subr.mxu0 0.0
        %475 = vmatpush1.msra.mxu0 0.0
        %476 = vmatprep.subr.mxu0 0.0
        %477 = vmatpush1.msra.mxu0 0.0
        %478 = vmatprep.subr.mxu0 0.0
        %479 = vmatpush2.msra.mxu0 0.0
        %480 = vmatprep.subr.mxu0 0.0
        %481 = vmatpush2.msra.mxu0 0.0
        %482 = vmatprep.subr.mxu0 0.0
        %483 = vmatpush2.msra.mxu0 0.0
        %484 = vmatprep.subr.mxu0 0.0
        %485 = vmatpush2.msra.mxu0 0.0
        %486 = vmatprep.subr.mxu0 0.0
        %487 = vmatpush2.msra.mxu0 0.0
        %488 = vmatprep.subr.mxu0 0.0
        %489 = vmatpush2.msra.mxu0 0.0
        %490 = vmatprep.subr.mxu0 0.0
        %491 = vmatpush2.msra.mxu0 0.0
        %492 = vmatprep.subr.mxu0 0.0
        %493 = vmatpush2.msra.mxu0 0.0
        %494 = vmatprep.subr.mxu0 0.0
        %495 = vmatpush2.msra.mxu0 0.0
        %496 = vmatprep.subr.mxu0 0.0
        %497 = vmatpush2.msra.mxu0 0.0
        %498 = vmatprep.subr.mxu0 0.0
        %499 = vmatpush2.msra.mxu0 0.0
        %500 = vmatprep.subr.mxu0 0.0
        %501 = vmatpush2.msra.mxu0 0.0
        %502 = vmatprep.subr.mxu0 0.0
        %503 = vmatpush2.msra.mxu0 0.0
        %504 = vmatprep.subr.mxu0 0.0
        %505 = vmatpush2.msra.mxu0 0.0
        %506 = vmatprep.subr.mxu0 0.0
        %507 = vmatpush2.msra.mxu0 0.0
        %508 = vmatprep.subr.mxu0 0.0
        %509 = vmatpush2.msra.mxu0 0.0
        %510 = vmatprep.mubr.f32.mxu0 0.0
        %v511 = vand.u32 %v298, 4294901760
        %v512 = vsub.f32 %v298, %v511
        %513 = vmatmul.mubr.f32.gmra.mxu0 %v512
        %v514 = vpop.f32.mrf.mxu0
        %v515 = vadd.f32 %v443, %v514
        %v516 = vpop.f32.mrf.mxu0
        %517 = vdwg.mxu0
        %518 = vmatprep.subr.mxu0 0.0
        %519 = vmatpush1.msra.mxu0 0.0
        %520 = vmatprep.subr.mxu0 0.0
        %521 = vmatpush1.msra.mxu0 0.0
        %522 = vmatprep.subr.mxu0 0.0
        %523 = vmatpush1.msra.mxu0 0.0
        %524 = vmatprep.subr.mxu0 0.0
        %525 = vmatpush1.msra.mxu0 0.0
        %526 = vmatprep.subr.mxu0 0.0
        %527 = vmatpush1.msra.mxu0 0.0
        %528 = vmatprep.subr.mxu0 0.0
        %529 = vmatpush1.msra.mxu0 0.0
        %530 = vmatprep.subr.mxu0 0.0
        %531 = vmatpush1.msra.mxu0 0.0
        %532 = vmatprep.subr.mxu0 0.0
        %533 = vmatpush1.msra.mxu0 0.0
        %534 = vmatprep.subr.mxu0 0.0
        %535 = vmatpush1.msra.mxu0 0.0
        %536 = vmatprep.subr.mxu0 0.0
        %537 = vmatpush1.msra.mxu0 0.0
        %538 = vmatprep.subr.mxu0 0.0
        %539 = vmatpush1.msra.mxu0 0.0
        %540 = vmatprep.subr.mxu0 0.0
        %541 = vmatpush1.msra.mxu0 0.0
        %542 = vmatprep.subr.mxu0 0.0
        %543 = vmatpush1.msra.mxu0 1.0
        %544 = vmatprep.subr.mxu0 0.0
        %545 = vmatpush1.msra.mxu0 1.0
        %546 = vmatprep.subr.mxu0 0.0
        %547 = vmatpush1.msra.mxu0 1.0
        %548 = vmatprep.subr.mxu0 0.0
        %549 = vmatpush1.msra.mxu0 1.0
        %550 = vmatprep.subr.mxu0 0.0
        %551 = vmatpush2.msra.mxu0 0.0
        %552 = vmatprep.subr.mxu0 0.0
        %553 = vmatpush2.msra.mxu0 0.0
        %554 = vmatprep.subr.mxu0 0.0
        %555 = vmatpush2.msra.mxu0 0.0
        %556 = vmatprep.subr.mxu0 0.0
        %557 = vmatpush2.msra.mxu0 0.0
        %558 = vmatprep.subr.mxu0 0.0
        %559 = vmatpush2.msra.mxu0 0.0
        %560 = vmatprep.subr.mxu0 0.0
        %561 = vmatpush2.msra.mxu0 0.0
        %562 = vmatprep.subr.mxu0 0.0
        %563 = vmatpush2.msra.mxu0 0.0
        %564 = vmatprep.subr.mxu0 0.0
        %565 = vmatpush2.msra.mxu0 0.0
        %566 = vmatprep.subr.mxu0 0.0
        %567 = vmatpush2.msra.mxu0 0.0
        %568 = vmatprep.subr.mxu0 0.0
        %569 = vmatpush2.msra.mxu0 0.0
        %570 = vmatprep.subr.mxu0 0.0
        %571 = vmatpush2.msra.mxu0 0.0
        %572 = vmatprep.subr.mxu0 0.0
        %573 = vmatpush2.msra.mxu0 0.0
        %574 = vmatprep.subr.mxu0 0.0
        %575 = vmatpush2.msra.mxu0 0.0
        %576 = vmatprep.subr.mxu0 0.0
        %577 = vmatpush2.msra.mxu0 0.0
        %578 = vmatprep.subr.mxu0 0.0
        %579 = vmatpush2.msra.mxu0 0.0
        %580 = vmatprep.subr.mxu0 0.0
        %581 = vmatpush2.msra.mxu0 0.0
        %582 = vmatprep.mubr.f32.mxu0 0.0
        %v583 = vand.u32 %v298, 4294901760
        %v584 = vsub.f32 %v298, %v583
        %v585 = vand.u32 %v584, 4294901760
        %586 = vmatmul.mubr.f32.gmra.mxu0 %v585
        %v587 = vpop.f32.mrf.mxu0
        %v588 = vadd.f32 %v515, %v587
        %v589 = vpop.f32.mrf.mxu0
        %590 = vdwg.mxu0
        %591 = vmatprep.subr.mxu0 0.0
        %592 = vmatpush1.msra.mxu0 0.0
        %593 = vmatprep.subr.mxu0 0.0
        %594 = vmatpush1.msra.mxu0 0.0
        %595 = vmatprep.subr.mxu0 0.0
        %596 = vmatpush1.msra.mxu0 0.0
        %597 = vmatprep.subr.mxu0 0.0
        %598 = vmatpush1.msra.mxu0 0.0
        %599 = vmatprep.subr.mxu0 0.0
        %600 = vmatpush1.msra.mxu0 0.0
        %601 = vmatprep.subr.mxu0 0.0
        %602 = vmatpush1.msra.mxu0 0.0
        %603 = vmatprep.subr.mxu0 0.0
        %604 = vmatpush1.msra.mxu0 0.0
        %605 = vmatprep.subr.mxu0 0.0
        %606 = vmatpush1.msra.mxu0 0.0
        %607 = vmatprep.subr.mxu0 0.0
        %608 = vmatpush1.msra.mxu0 0.0
        %609 = vmatprep.subr.mxu0 0.0
        %610 = vmatpush1.msra.mxu0 0.0
        %611 = vmatprep.subr.mxu0 0.0
        %612 = vmatpush1.msra.mxu0 0.0
        %613 = vmatprep.subr.mxu0 0.0
        %614 = vmatpush1.msra.mxu0 0.0
        %615 = vmatprep.subr.mxu0 0.0
        %616 = vmatpush1.msra.mxu0 0.0
        %617 = vmatprep.subr.mxu0 0.0
        %618 = vmatpush1.msra.mxu0 0.0
        %619 = vmatprep.subr.mxu0 0.0
        %620 = vmatpush1.msra.mxu0 0.0
        %621 = vmatprep.subr.mxu0 0.0
        %622 = vmatpush1.msra.mxu0 0.0
        %623 = vmatprep.subr.mxu0 0.0
        %624 = vmatpush2.msra.mxu0 0.0
        %625 = vmatprep.subr.mxu0 0.0
        %626 = vmatpush2.msra.mxu0 0.0
        %627 = vmatprep.subr.mxu0 0.0
        %628 = vmatpush2.msra.mxu0 0.0
        %629 = vmatprep.subr.mxu0 0.0
        %630 = vmatpush2.msra.mxu0 0.0
        %631 = vmatprep.subr.mxu0 0.0
        %632 = vmatpush2.msra.mxu0 0.0
        %633 = vmatprep.subr.mxu0 0.0
        %634 = vmatpush2.msra.mxu0 0.0
        %635 = vmatprep.subr.mxu0 0.0
        %636 = vmatpush2.msra.mxu0 0.0
        %637 = vmatprep.subr.mxu0 0.0
        %638 = vmatpush2.msra.mxu0 0.0
        %639 = vmatprep.subr.mxu0 0.0
        %640 = vmatpush2.msra.mxu0 0.0
        %641 = vmatprep.subr.mxu0 0.0
        %642 = vmatpush2.msra.mxu0 0.0
        %643 = vmatprep.subr.mxu0 0.0
        %644 = vmatpush2.msra.mxu0 0.0
        %645 = vmatprep.subr.mxu0 0.0
        %646 = vmatpush2.msra.mxu0 0.0
        %647 = vmatprep.subr.mxu0 0.0
        %648 = vmatpush2.msra.mxu0 0.0
        %649 = vmatprep.subr.mxu0 0.0
        %650 = vmatpush2.msra.mxu0 0.0
        %651 = vmatprep.subr.mxu0 0.0
        %652 = vmatpush2.msra.mxu0 0.0
        %653 = vmatprep.subr.mxu0 0.0
        %654 = vmatpush2.msra.mxu0 0.0
        %655 = vmatprep.mubr.f32.mxu0 0.0
        %v656 = vand.u32 %v298, 4294901760
        %657 = vmatmul.mubr.f32.gmra.mxu0 %v656
        %v658 = vpop.f32.mrf.mxu0
        %v659 = vadd.f32 %v588, %v658
        %v660 = vpop.f32.mrf.mxu0
        %661 = vdwg.mxu0
        %662 = vmatprep.subr.mxu0 0.0
        %663 = vmatpush1.msra.mxu0 0.0
        %664 = vmatprep.subr.mxu0 0.0
        %665 = vmatpush1.msra.mxu0 0.0
        %666 = vmatprep.subr.mxu0 0.0
        %667 = vmatpush1.msra.mxu0 0.0
        %668 = vmatprep.subr.mxu0 0.0
        %669 = vmatpush1.msra.mxu0 0.0
        %670 = vmatprep.subr.mxu0 0.0
        %671 = vmatpush1.msra.mxu0 0.0
        %672 = vmatprep.subr.mxu0 0.0
        %673 = vmatpush1.msra.mxu0 0.0
        %674 = vmatprep.subr.mxu0 0.0
        %675 = vmatpush1.msra.mxu0 0.0
        %676 = vmatprep.subr.mxu0 0.0
        %677 = vmatpush1.msra.mxu0 0.0
        %678 = vmatprep.subr.mxu0 0.0
        %679 = vmatpush1.msra.mxu0 0.0
        %680 = vmatprep.subr.mxu0 0.0
        %681 = vmatpush1.msra.mxu0 0.0
        %682 = vmatprep.subr.mxu0 0.0
        %683 = vmatpush1.msra.mxu0 0.0
        %684 = vmatprep.subr.mxu0 0.0
        %685 = vmatpush1.msra.mxu0 0.0
        %686 = vmatprep.subr.mxu0 0.0
        %687 = vmatpush1.msra.mxu0 1.0
        %688 = vmatprep.subr.mxu0 0.0
        %689 = vmatpush1.msra.mxu0 1.0
        %690 = vmatprep.subr.mxu0 0.0
        %691 = vmatpush1.msra.mxu0 1.0
        %692 = vmatprep.subr.mxu0 0.0
        %693 = vmatpush1.msra.mxu0 1.0
        %694 = vmatprep.subr.mxu0 0.0
        %695 = vmatpush2.msra.mxu0 0.0
        %696 = vmatprep.subr.mxu0 0.0
        %697 = vmatpush2.msra.mxu0 0.0
        %698 = vmatprep.subr.mxu0 0.0
        %699 = vmatpush2.msra.mxu0 0.0
        %700 = vmatprep.subr.mxu0 0.0
        %701 = vmatpush2.msra.mxu0 0.0
        %702 = vmatprep.subr.mxu0 0.0
        %703 = vmatpush2.msra.mxu0 0.0
        %704 = vmatprep.subr.mxu0 0.0
        %705 = vmatpush2.msra.mxu0 0.0
        %706 = vmatprep.subr.mxu0 0.0
        %707 = vmatpush2.msra.mxu0 0.0
        %708 = vmatprep.subr.mxu0 0.0
        %709 = vmatpush2.msra.mxu0 0.0
        %710 = vmatprep.subr.mxu0 0.0
        %711 = vmatpush2.msra.mxu0 0.0
        %712 = vmatprep.subr.mxu0 0.0
        %713 = vmatpush2.msra.mxu0 0.0
        %714 = vmatprep.subr.mxu0 0.0
        %715 = vmatpush2.msra.mxu0 0.0
        %716 = vmatprep.subr.mxu0 0.0
        %717 = vmatpush2.msra.mxu0 0.0
        %718 = vmatprep.subr.mxu0 0.0
        %719 = vmatpush2.msra.mxu0 0.0
        %720 = vmatprep.subr.mxu0 0.0
        %721 = vmatpush2.msra.mxu0 0.0
        %722 = vmatprep.subr.mxu0 0.0
        %723 = vmatpush2.msra.mxu0 0.0
        %724 = vmatprep.subr.mxu0 0.0
        %725 = vmatpush2.msra.mxu0 0.0
        %726 = vmatprep.mubr.f32.mxu0 0.0
        %v727 = vand.u32 %v298, 4294901760
        %728 = vmatmul.mubr.f32.gmra.mxu0 %v727
        %v729 = vpop.f32.mrf.mxu0
        %v730 = vadd.f32 %v659, %v729
        %v731 = vpop.f32.mrf.mxu0
        %732 = vdwg.mxu0
        %v734 = vsel %vm296, %v294, 0
        %736 = vmatprep.subr.mxu0 0.0
        %737 = vmatpush1.msra.mxu0 0.0
        %738 = vmatprep.subr.mxu0 0.0
        %739 = vmatpush1.msra.mxu0 0.0
        %740 = vmatprep.subr.mxu0 0.0
        %741 = vmatpush1.msra.mxu0 0.0
        %742 = vmatprep.subr.mxu0 0.0
        %743 = vmatpush1.msra.mxu0 0.0
        %744 = vmatprep.subr.mxu0 0.0
        %745 = vmatpush1.msra.mxu0 0.0
        %746 = vmatprep.subr.mxu0 0.0
        %747 = vmatpush1.msra.mxu0 0.0
        %748 = vmatprep.subr.mxu0 0.0
        %749 = vmatpush1.msra.mxu0 0.0
        %750 = vmatprep.subr.mxu0 0.0
        %751 = vmatpush1.msra.mxu0 0.0
        %752 = vmatprep.subr.mxu0 0.0
        %753 = vmatpush1.msra.mxu0 0.0
        %754 = vmatprep.subr.mxu0 0.0
        %755 = vmatpush1.msra.mxu0 0.0
        %756 = vmatprep.subr.mxu0 0.0
        %757 = vmatpush1.msra.mxu0 0.0
        %758 = vmatprep.subr.mxu0 0.0
        %759 = vmatpush1.msra.mxu0 0.0
        %760 = vmatprep.subr.mxu0 0.0
        %761 = vmatpush1.msra.mxu0 1.0
        %762 = vmatprep.subr.mxu0 0.0
        %763 = vmatpush1.msra.mxu0 1.0
        %764 = vmatprep.subr.mxu0 0.0
        %765 = vmatpush1.msra.mxu0 1.0
        %766 = vmatprep.subr.mxu0 0.0
        %767 = vmatpush1.msra.mxu0 1.0
        %768 = vmatprep.subr.mxu0 0.0
        %769 = vmatpush2.msra.mxu0 0.0
        %770 = vmatprep.subr.mxu0 0.0
        %771 = vmatpush2.msra.mxu0 0.0
        %772 = vmatprep.subr.mxu0 0.0
        %773 = vmatpush2.msra.mxu0 0.0
        %774 = vmatprep.subr.mxu0 0.0
        %775 = vmatpush2.msra.mxu0 0.0
        %776 = vmatprep.subr.mxu0 0.0
        %777 = vmatpush2.msra.mxu0 0.0
        %778 = vmatprep.subr.mxu0 0.0
        %779 = vmatpush2.msra.mxu0 0.0
        %780 = vmatprep.subr.mxu0 0.0
        %781 = vmatpush2.msra.mxu0 0.0
        %782 = vmatprep.subr.mxu0 0.0
        %783 = vmatpush2.msra.mxu0 0.0
        %784 = vmatprep.subr.mxu0 0.0
        %785 = vmatpush2.msra.mxu0 0.0
        %786 = vmatprep.subr.mxu0 0.0
        %787 = vmatpush2.msra.mxu0 0.0
        %788 = vmatprep.subr.mxu0 0.0
        %789 = vmatpush2.msra.mxu0 0.0
        %790 = vmatprep.subr.mxu0 0.0
        %791 = vmatpush2.msra.mxu0 0.0
        %792 = vmatprep.subr.mxu0 0.0
        %793 = vmatpush2.msra.mxu0 0.0
        %794 = vmatprep.subr.mxu0 0.0
        %795 = vmatpush2.msra.mxu0 0.0
        %796 = vmatprep.subr.mxu0 0.0
        %797 = vmatpush2.msra.mxu0 0.0
        %798 = vmatprep.subr.mxu0 0.0
        %799 = vmatpush2.msra.mxu0 0.0
        %800 = vmatprep.mubr.f32.mxu0 0.0
        %v801 = vand.u32 %v734, 4294901760
        %v802 = vsub.f32 %v734, %v801
        %v803 = vand.u32 %v802, 4294901760
        %v804 = vsub.f32 %v802, %v803
        %v805 = vand.u32 %v804, 4294901760
        %806 = vmatmul.mubr.f32.gmra.mxu0 %v805
        %v807 = vpop.f32.mrf.mxu0
        %v808 = vadd.f32 0.0, %v807
        %v809 = vpop.f32.mrf.mxu0
        %810 = vdwg.mxu0
        %811 = vmatprep.subr.mxu0 0.0
        %812 = vmatpush1.msra.mxu0 0.0
        %813 = vmatprep.subr.mxu0 0.0
        %814 = vmatpush1.msra.mxu0 0.0
        %815 = vmatprep.subr.mxu0 0.0
        %816 = vmatpush1.msra.mxu0 0.0
        %817 = vmatprep.subr.mxu0 0.0
        %818 = vmatpush1.msra.mxu0 0.0
        %819 = vmatprep.subr.mxu0 0.0
        %820 = vmatpush1.msra.mxu0 0.0
        %821 = vmatprep.subr.mxu0 0.0
        %822 = vmatpush1.msra.mxu0 0.0
        %823 = vmatprep.subr.mxu0 0.0
        %824 = vmatpush1.msra.mxu0 0.0
        %825 = vmatprep.subr.mxu0 0.0
        %826 = vmatpush1.msra.mxu0 0.0
        %827 = vmatprep.subr.mxu0 0.0
        %828 = vmatpush1.msra.mxu0 0.0
        %829 = vmatprep.subr.mxu0 0.0
        %830 = vmatpush1.msra.mxu0 0.0
        %831 = vmatprep.subr.mxu0 0.0
        %832 = vmatpush1.msra.mxu0 0.0
        %833 = vmatprep.subr.mxu0 0.0
        %834 = vmatpush1.msra.mxu0 0.0
        %835 = vmatprep.subr.mxu0 0.0
        %836 = vmatpush1.msra.mxu0 0.0
        %837 = vmatprep.subr.mxu0 0.0
        %838 = vmatpush1.msra.mxu0 0.0
        %839 = vmatprep.subr.mxu0 0.0
        %840 = vmatpush1.msra.mxu0 0.0
        %841 = vmatprep.subr.mxu0 0.0
        %842 = vmatpush1.msra.mxu0 0.0
        %843 = vmatprep.subr.mxu0 0.0
        %844 = vmatpush2.msra.mxu0 0.0
        %845 = vmatprep.subr.mxu0 0.0
        %846 = vmatpush2.msra.mxu0 0.0
        %847 = vmatprep.subr.mxu0 0.0
        %848 = vmatpush2.msra.mxu0 0.0
        %849 = vmatprep.subr.mxu0 0.0
        %850 = vmatpush2.msra.mxu0 0.0
        %851 = vmatprep.subr.mxu0 0.0
        %852 = vmatpush2.msra.mxu0 0.0
        %853 = vmatprep.subr.mxu0 0.0
        %854 = vmatpush2.msra.mxu0 0.0
        %855 = vmatprep.subr.mxu0 0.0
        %856 = vmatpush2.msra.mxu0 0.0
        %857 = vmatprep.subr.mxu0 0.0
        %858 = vmatpush2.msra.mxu0 0.0
        %859 = vmatprep.subr.mxu0 0.0
        %860 = vmatpush2.msra.mxu0 0.0
        %861 = vmatprep.subr.mxu0 0.0
        %862 = vmatpush2.msra.mxu0 0.0
        %863 = vmatprep.subr.mxu0 0.0
        %864 = vmatpush2.msra.mxu0 0.0
        %865 = vmatprep.subr.mxu0 0.0
        %866 = vmatpush2.msra.mxu0 0.0
        %867 = vmatprep.subr.mxu0 0.0
        %868 = vmatpush2.msra.mxu0 0.0
        %869 = vmatprep.subr.mxu0 0.0
        %870 = vmatpush2.msra.mxu0 0.0
        %871 = vmatprep.subr.mxu0 0.0
        %872 = vmatpush2.msra.mxu0 0.0
        %873 = vmatprep.subr.mxu0 0.0
        %874 = vmatpush2.msra.mxu0 0.0
        %875 = vmatprep.mubr.f32.mxu0 0.0
        %v876 = vand.u32 %v734, 4294901760
        %877 = vmatmul.mubr.f32.gmra.mxu0 %v876
        %v878 = vpop.f32.mrf.mxu0
        %v879 = vadd.f32 %v808, %v878
        %v880 = vpop.f32.mrf.mxu0
        %881 = vdwg.mxu0
        %882 = vmatprep.subr.mxu0 0.0
        %883 = vmatpush1.msra.mxu0 0.0
        %884 = vmatprep.subr.mxu0 0.0
        %885 = vmatpush1.msra.mxu0 0.0
        %886 = vmatprep.subr.mxu0 0.0
        %887 = vmatpush1.msra.mxu0 0.0
        %888 = vmatprep.subr.mxu0 0.0
        %889 = vmatpush1.msra.mxu0 0.0
        %890 = vmatprep.subr.mxu0 0.0
        %891 = vmatpush1.msra.mxu0 0.0
        %892 = vmatprep.subr.mxu0 0.0
        %893 = vmatpush1.msra.mxu0 0.0
        %894 = vmatprep.subr.mxu0 0.0
        %895 = vmatpush1.msra.mxu0 0.0
        %896 = vmatprep.subr.mxu0 0.0
        %897 = vmatpush1.msra.mxu0 0.0
        %898 = vmatprep.subr.mxu0 0.0
        %899 = vmatpush1.msra.mxu0 0.0
        %900 = vmatprep.subr.mxu0 0.0
        %901 = vmatpush1.msra.mxu0 0.0
        %902 = vmatprep.subr.mxu0 0.0
        %903 = vmatpush1.msra.mxu0 0.0
        %904 = vmatprep.subr.mxu0 0.0
        %905 = vmatpush1.msra.mxu0 0.0
        %906 = vmatprep.subr.mxu0 0.0
        %907 = vmatpush1.msra.mxu0 0.0
        %908 = vmatprep.subr.mxu0 0.0
        %909 = vmatpush1.msra.mxu0 0.0
        %910 = vmatprep.subr.mxu0 0.0
        %911 = vmatpush1.msra.mxu0 0.0
        %912 = vmatprep.subr.mxu0 0.0
        %913 = vmatpush1.msra.mxu0 0.0
        %914 = vmatprep.subr.mxu0 0.0
        %915 = vmatpush2.msra.mxu0 0.0
        %916 = vmatprep.subr.mxu0 0.0
        %917 = vmatpush2.msra.mxu0 0.0
        %918 = vmatprep.subr.mxu0 0.0
        %919 = vmatpush2.msra.mxu0 0.0
        %920 = vmatprep.subr.mxu0 0.0
        %921 = vmatpush2.msra.mxu0 0.0
        %922 = vmatprep.subr.mxu0 0.0
        %923 = vmatpush2.msra.mxu0 0.0
        %924 = vmatprep.subr.mxu0 0.0
        %925 = vmatpush2.msra.mxu0 0.0
        %926 = vmatprep.subr.mxu0 0.0
        %927 = vmatpush2.msra.mxu0 0.0
        %928 = vmatprep.subr.mxu0 0.0
        %929 = vmatpush2.msra.mxu0 0.0
        %930 = vmatprep.subr.mxu0 0.0
        %931 = vmatpush2.msra.mxu0 0.0
        %932 = vmatprep.subr.mxu0 0.0
        %933 = vmatpush2.msra.mxu0 0.0
        %934 = vmatprep.subr.mxu0 0.0
        %935 = vmatpush2.msra.mxu0 0.0
        %936 = vmatprep.subr.mxu0 0.0
        %937 = vmatpush2.msra.mxu0 0.0
        %938 = vmatprep.subr.mxu0 0.0
        %939 = vmatpush2.msra.mxu0 0.0
        %940 = vmatprep.subr.mxu0 0.0
        %941 = vmatpush2.msra.mxu0 0.0
        %942 = vmatprep.subr.mxu0 0.0
        %943 = vmatpush2.msra.mxu0 0.0
        %944 = vmatprep.subr.mxu0 0.0
        %945 = vmatpush2.msra.mxu0 0.0
        %946 = vmatprep.mubr.f32.mxu0 0.0
        %v947 = vand.u32 %v734, 4294901760
        %v948 = vsub.f32 %v734, %v947
        %949 = vmatmul.mubr.f32.gmra.mxu0 %v948
        %v950 = vpop.f32.mrf.mxu0
        %v951 = vadd.f32 %v879, %v950
        %v952 = vpop.f32.mrf.mxu0
        %953 = vdwg.mxu0
        %954 = vmatprep.subr.mxu0 0.0
        %955 = vmatpush1.msra.mxu0 0.0
        %956 = vmatprep.subr.mxu0 0.0
        %957 = vmatpush1.msra.mxu0 0.0
        %958 = vmatprep.subr.mxu0 0.0
        %959 = vmatpush1.msra.mxu0 0.0
        %960 = vmatprep.subr.mxu0 0.0
        %961 = vmatpush1.msra.mxu0 0.0
        %962 = vmatprep.subr.mxu0 0.0
        %963 = vmatpush1.msra.mxu0 0.0
        %964 = vmatprep.subr.mxu0 0.0
        %965 = vmatpush1.msra.mxu0 0.0
        %966 = vmatprep.subr.mxu0 0.0
        %967 = vmatpush1.msra.mxu0 0.0
        %968 = vmatprep.subr.mxu0 0.0
        %969 = vmatpush1.msra.mxu0 0.0
        %970 = vmatprep.subr.mxu0 0.0
        %971 = vmatpush1.msra.mxu0 0.0
        %972 = vmatprep.subr.mxu0 0.0
        %973 = vmatpush1.msra.mxu0 0.0
        %974 = vmatprep.subr.mxu0 0.0
        %975 = vmatpush1.msra.mxu0 0.0
        %976 = vmatprep.subr.mxu0 0.0
        %977 = vmatpush1.msra.mxu0 0.0
        %978 = vmatprep.subr.mxu0 0.0
        %979 = vmatpush1.msra.mxu0 1.0
        %980 = vmatprep.subr.mxu0 0.0
        %981 = vmatpush1.msra.mxu0 1.0
        %982 = vmatprep.subr.mxu0 0.0
        %983 = vmatpush1.msra.mxu0 1.0
        %984 = vmatprep.subr.mxu0 0.0
        %985 = vmatpush1.msra.mxu0 1.0
        %986 = vmatprep.subr.mxu0 0.0
        %987 = vmatpush2.msra.mxu0 0.0
        %988 = vmatprep.subr.mxu0 0.0
        %989 = vmatpush2.msra.mxu0 0.0
        %990 = vmatprep.subr.mxu0 0.0
        %991 = vmatpush2.msra.mxu0 0.0
        %992 = vmatprep.subr.mxu0 0.0
        %993 = vmatpush2.msra.mxu0 0.0
        %994 = vmatprep.subr.mxu0 0.0
        %995 = vmatpush2.msra.mxu0 0.0
        %996 = vmatprep.subr.mxu0 0.0
        %997 = vmatpush2.msra.mxu0 0.0
        %998 = vmatprep.subr.mxu0 0.0
        %999 = vmatpush2.msra.mxu0 0.0
        %1000 = vmatprep.subr.mxu0 0.0
        %1001 = vmatpush2.msra.mxu0 0.0
        %1002 = vmatprep.subr.mxu0 0.0
        %1003 = vmatpush2.msra.mxu0 0.0
        %1004 = vmatprep.subr.mxu0 0.0
        %1005 = vmatpush2.msra.mxu0 0.0
        %1006 = vmatprep.subr.mxu0 0.0
        %1007 = vmatpush2.msra.mxu0 0.0
        %1008 = vmatprep.subr.mxu0 0.0
        %1009 = vmatpush2.msra.mxu0 0.0
        %1010 = vmatprep.subr.mxu0 0.0
        %1011 = vmatpush2.msra.mxu0 0.0
        %1012 = vmatprep.subr.mxu0 0.0
        %1013 = vmatpush2.msra.mxu0 0.0
        %1014 = vmatprep.subr.mxu0 0.0
        %1015 = vmatpush2.msra.mxu0 0.0
        %1016 = vmatprep.subr.mxu0 0.0
        %1017 = vmatpush2.msra.mxu0 0.0
        %1018 = vmatprep.mubr.f32.mxu0 0.0
        %v1019 = vand.u32 %v734, 4294901760
        %v1020 = vsub.f32 %v734, %v1019
        %v1021 = vand.u32 %v1020, 4294901760
        %1022 = vmatmul.mubr.f32.gmra.mxu0 %v1021
        %v1023 = vpop.f32.mrf.mxu0
        %v1024 = vadd.f32 %v951, %v1023
        %v1025 = vpop.f32.mrf.mxu0
        %1026 = vdwg.mxu0
        %1027 = vmatprep.subr.mxu0 0.0
        %1028 = vmatpush1.msra.mxu0 0.0
        %1029 = vmatprep.subr.mxu0 0.0
        %1030 = vmatpush1.msra.mxu0 0.0
        %1031 = vmatprep.subr.mxu0 0.0
        %1032 = vmatpush1.msra.mxu0 0.0
        %1033 = vmatprep.subr.mxu0 0.0
        %1034 = vmatpush1.msra.mxu0 0.0
        %1035 = vmatprep.subr.mxu0 0.0
        %1036 = vmatpush1.msra.mxu0 0.0
        %1037 = vmatprep.subr.mxu0 0.0
        %1038 = vmatpush1.msra.mxu0 0.0
        %1039 = vmatprep.subr.mxu0 0.0
        %1040 = vmatpush1.msra.mxu0 0.0
        %1041 = vmatprep.subr.mxu0 0.0
        %1042 = vmatpush1.msra.mxu0 0.0
        %1043 = vmatprep.subr.mxu0 0.0
        %1044 = vmatpush1.msra.mxu0 0.0
        %1045 = vmatprep.subr.mxu0 0.0
        %1046 = vmatpush1.msra.mxu0 0.0
        %1047 = vmatprep.subr.mxu0 0.0
        %1048 = vmatpush1.msra.mxu0 0.0
        %1049 = vmatprep.subr.mxu0 0.0
        %1050 = vmatpush1.msra.mxu0 0.0
        %1051 = vmatprep.subr.mxu0 0.0
        %1052 = vmatpush1.msra.mxu0 0.0
        %1053 = vmatprep.subr.mxu0 0.0
        %1054 = vmatpush1.msra.mxu0 0.0
        %1055 = vmatprep.subr.mxu0 0.0
        %1056 = vmatpush1.msra.mxu0 0.0
        %1057 = vmatprep.subr.mxu0 0.0
        %1058 = vmatpush1.msra.mxu0 0.0
        %1059 = vmatprep.subr.mxu0 0.0
        %1060 = vmatpush2.msra.mxu0 0.0
        %1061 = vmatprep.subr.mxu0 0.0
        %1062 = vmatpush2.msra.mxu0 0.0
        %1063 = vmatprep.subr.mxu0 0.0
        %1064 = vmatpush2.msra.mxu0 0.0
        %1065 = vmatprep.subr.mxu0 0.0
        %1066 = vmatpush2.msra.mxu0 0.0
        %1067 = vmatprep.subr.mxu0 0.0
        %1068 = vmatpush2.msra.mxu0 0.0
        %1069 = vmatprep.subr.mxu0 0.0
        %1070 = vmatpush2.msra.mxu0 0.0
        %1071 = vmatprep.subr.mxu0 0.0
        %1072 = vmatpush2.msra.mxu0 0.0
        %1073 = vmatprep.subr.mxu0 0.0
        %1074 = vmatpush2.msra.mxu0 0.0
        %1075 = vmatprep.subr.mxu0 0.0
        %1076 = vmatpush2.msra.mxu0 0.0
        %1077 = vmatprep.subr.mxu0 0.0
        %1078 = vmatpush2.msra.mxu0 0.0
        %1079 = vmatprep.subr.mxu0 0.0
        %1080 = vmatpush2.msra.mxu0 0.0
        %1081 = vmatprep.subr.mxu0 0.0
        %1082 = vmatpush2.msra.mxu0 0.0
        %1083 = vmatprep.subr.mxu0 0.0
        %1084 = vmatpush2.msra.mxu0 0.0
        %1085 = vmatprep.subr.mxu0 0.0
        %1086 = vmatpush2.msra.mxu0 0.0
        %1087 = vmatprep.subr.mxu0 0.0
        %1088 = vmatpush2.msra.mxu0 0.0
        %1089 = vmatprep.subr.mxu0 0.0
        %1090 = vmatpush2.msra.mxu0 0.0
        %1091 = vmatprep.mubr.f32.mxu0 0.0
        %v1092 = vand.u32 %v734, 4294901760
        %1093 = vmatmul.mubr.f32.gmra.mxu0 %v1092
        %v1094 = vpop.f32.mrf.mxu0
        %v1095 = vadd.f32 %v1024, %v1094
        %v1096 = vpop.f32.mrf.mxu0
        %1097 = vdwg.mxu0
        %1098 = vmatprep.subr.mxu0 0.0
        %1099 = vmatpush1.msra.mxu0 0.0
        %1100 = vmatprep.subr.mxu0 0.0
        %1101 = vmatpush1.msra.mxu0 0.0
        %1102 = vmatprep.subr.mxu0 0.0
        %1103 = vmatpush1.msra.mxu0 0.0
        %1104 = vmatprep.subr.mxu0 0.0
        %1105 = vmatpush1.msra.mxu0 0.0
        %1106 = vmatprep.subr.mxu0 0.0
        %1107 = vmatpush1.msra.mxu0 0.0
        %1108 = vmatprep.subr.mxu0 0.0
        %1109 = vmatpush1.msra.mxu0 0.0
        %1110 = vmatprep.subr.mxu0 0.0
        %1111 = vmatpush1.msra.mxu0 0.0
        %1112 = vmatprep.subr.mxu0 0.0
        %1113 = vmatpush1.msra.mxu0 0.0
        %1114 = vmatprep.subr.mxu0 0.0
        %1115 = vmatpush1.msra.mxu0 0.0
        %1116 = vmatprep.subr.mxu0 0.0
        %1117 = vmatpush1.msra.mxu0 0.0
        %1118 = vmatprep.subr.mxu0 0.0
        %1119 = vmatpush1.msra.mxu0 0.0
        %1120 = vmatprep.subr.mxu0 0.0
        %1121 = vmatpush1.msra.mxu0 0.0
        %1122 = vmatprep.subr.mxu0 0.0
        %1123 = vmatpush1.msra.mxu0 1.0
        %1124 = vmatprep.subr.mxu0 0.0
        %1125 = vmatpush1.msra.mxu0 1.0
        %1126 = vmatprep.subr.mxu0 0.0
        %1127 = vmatpush1.msra.mxu0 1.0
        %1128 = vmatprep.subr.mxu0 0.0
        %1129 = vmatpush1.msra.mxu0 1.0
        %1130 = vmatprep.subr.mxu0 0.0
        %1131 = vmatpush2.msra.mxu0 0.0
        %1132 = vmatprep.subr.mxu0 0.0
        %1133 = vmatpush2.msra.mxu0 0.0
        %1134 = vmatprep.subr.mxu0 0.0
        %1135 = vmatpush2.msra.mxu0 0.0
        %1136 = vmatprep.subr.mxu0 0.0
        %1137 = vmatpush2.msra.mxu0 0.0
        %1138 = vmatprep.subr.mxu0 0.0
        %1139 = vmatpush2.msra.mxu0 0.0
        %1140 = vmatprep.subr.mxu0 0.0
        %1141 = vmatpush2.msra.mxu0 0.0
        %1142 = vmatprep.subr.mxu0 0.0
        %1143 = vmatpush2.msra.mxu0 0.0
        %1144 = vmatprep.subr.mxu0 0.0
        %1145 = vmatpush2.msra.mxu0 0.0
        %1146 = vmatprep.subr.mxu0 0.0
        %1147 = vmatpush2.msra.mxu0 0.0
        %1148 = vmatprep.subr.mxu0 0.0
        %1149 = vmatpush2.msra.mxu0 0.0
        %1150 = vmatprep.subr.mxu0 0.0
        %1151 = vmatpush2.msra.mxu0 0.0
        %1152 = vmatprep.subr.mxu0 0.0
        %1153 = vmatpush2.msra.mxu0 0.0
        %1154 = vmatprep.subr.mxu0 0.0
        %1155 = vmatpush2.msra.mxu0 0.0
        %1156 = vmatprep.subr.mxu0 0.0
        %1157 = vmatpush2.msra.mxu0 0.0
        %1158 = vmatprep.subr.mxu0 0.0
        %1159 = vmatpush2.msra.mxu0 0.0
        %1160 = vmatprep.subr.mxu0 0.0
        %1161 = vmatpush2.msra.mxu0 0.0
        %1162 = vmatprep.mubr.f32.mxu0 0.0
        %v1163 = vand.u32 %v734, 4294901760
        %1164 = vmatmul.mubr.f32.gmra.mxu0 %v1163
        %v1165 = vpop.f32.mrf.mxu0
        %v1166 = vadd.f32 %v1095, %v1165
        %v1167 = vpop.f32.mrf.mxu0
        %1168 = vdwg.mxu0
        %v1170 = vsel %vm296, %v295, 0
        %1172 = vmatprep.subr.mxu0 0.0
        %1173 = vmatpush1.msra.mxu0 0.0
        %1174 = vmatprep.subr.mxu0 0.0
        %1175 = vmatpush1.msra.mxu0 0.0
        %1176 = vmatprep.subr.mxu0 0.0
        %1177 = vmatpush1.msra.mxu0 0.0
        %1178 = vmatprep.subr.mxu0 0.0
        %1179 = vmatpush1.msra.mxu0 0.0
        %1180 = vmatprep.subr.mxu0 0.0
        %1181 = vmatpush1.msra.mxu0 0.0
        %1182 = vmatprep.subr.mxu0 0.0
        %1183 = vmatpush1.msra.mxu0 0.0
        %1184 = vmatprep.subr.mxu0 0.0
        %1185 = vmatpush1.msra.mxu0 0.0
        %1186 = vmatprep.subr.mxu0 0.0
        %1187 = vmatpush1.msra.mxu0 0.0
        %1188 = vmatprep.subr.mxu0 0.0
        %1189 = vmatpush1.msra.mxu0 0.0
        %1190 = vmatprep.subr.mxu0 0.0
        %1191 = vmatpush1.msra.mxu0 0.0
        %1192 = vmatprep.subr.mxu0 0.0
        %1193 = vmatpush1.msra.mxu0 0.0
        %1194 = vmatprep.subr.mxu0 0.0
        %1195 = vmatpush1.msra.mxu0 0.0
        %1196 = vmatprep.subr.mxu0 0.0
        %1197 = vmatpush1.msra.mxu0 1.0
        %1198 = vmatprep.subr.mxu0 0.0
        %1199 = vmatpush1.msra.mxu0 1.0
        %1200 = vmatprep.subr.mxu0 0.0
        %1201 = vmatpush1.msra.mxu0 1.0
        %1202 = vmatprep.subr.mxu0 0.0
        %1203 = vmatpush1.msra.mxu0 1.0
        %1204 = vmatprep.subr.mxu0 0.0
        %1205 = vmatpush2.msra.mxu0 0.0
        %1206 = vmatprep.subr.mxu0 0.0
        %1207 = vmatpush2.msra.mxu0 0.0
        %1208 = vmatprep.subr.mxu0 0.0
        %1209 = vmatpush2.msra.mxu0 0.0
        %1210 = vmatprep.subr.mxu0 0.0
        %1211 = vmatpush2.msra.mxu0 0.0
        %1212 = vmatprep.subr.mxu0 0.0
        %1213 = vmatpush2.msra.mxu0 0.0
        %1214 = vmatprep.subr.mxu0 0.0
        %1215 = vmatpush2.msra.mxu0 0.0
        %1216 = vmatprep.subr.mxu0 0.0
        %1217 = vmatpush2.msra.mxu0 0.0
        %1218 = vmatprep.subr.mxu0 0.0
        %1219 = vmatpush2.msra.mxu0 0.0
        %1220 = vmatprep.subr.mxu0 0.0
        %1221 = vmatpush2.msra.mxu0 0.0
        %1222 = vmatprep.subr.mxu0 0.0
        %1223 = vmatpush2.msra.mxu0 0.0
        %1224 = vmatprep.subr.mxu0 0.0
        %1225 = vmatpush2.msra.mxu0 0.0
        %1226 = vmatprep.subr.mxu0 0.0
        %1227 = vmatpush2.msra.mxu0 0.0
        %1228 = vmatprep.subr.mxu0 0.0
        %1229 = vmatpush2.msra.mxu0 0.0
        %1230 = vmatprep.subr.mxu0 0.0
        %1231 = vmatpush2.msra.mxu0 0.0
        %1232 = vmatprep.subr.mxu0 0.0
        %1233 = vmatpush2.msra.mxu0 0.0
        %1234 = vmatprep.subr.mxu0 0.0
        %1235 = vmatpush2.msra.mxu0 0.0
        %1236 = vmatprep.mubr.f32.mxu0 0.0
        %v1237 = vand.u32 %v1170, 4294901760
        %v1238 = vsub.f32 %v1170, %v1237
        %v1239 = vand.u32 %v1238, 4294901760
        %v1240 = vsub.f32 %v1238, %v1239
        %v1241 = vand.u32 %v1240, 4294901760
        %1242 = vmatmul.mubr.f32.gmra.mxu0 %v1241
        %v1243 = vpop.f32.mrf.mxu0
        %v1244 = vadd.f32 0.0, %v1243
        %v1245 = vpop.f32.mrf.mxu0
        %1246 = vdwg.mxu0
        %1247 = vmatprep.subr.mxu0 0.0
        %1248 = vmatpush1.msra.mxu0 0.0
        %1249 = vmatprep.subr.mxu0 0.0
        %1250 = vmatpush1.msra.mxu0 0.0
        %1251 = vmatprep.subr.mxu0 0.0
        %1252 = vmatpush1.msra.mxu0 0.0
        %1253 = vmatprep.subr.mxu0 0.0
        %1254 = vmatpush1.msra.mxu0 0.0
        %1255 = vmatprep.subr.mxu0 0.0
        %1256 = vmatpush1.msra.mxu0 0.0
        %1257 = vmatprep.subr.mxu0 0.0
        %1258 = vmatpush1.msra.mxu0 0.0
        %1259 = vmatprep.subr.mxu0 0.0
        %1260 = vmatpush1.msra.mxu0 0.0
        %1261 = vmatprep.subr.mxu0 0.0
        %1262 = vmatpush1.msra.mxu0 0.0
        %1263 = vmatprep.subr.mxu0 0.0
        %1264 = vmatpush1.msra.mxu0 0.0
        %1265 = vmatprep.subr.mxu0 0.0
        %1266 = vmatpush1.msra.mxu0 0.0
        %1267 = vmatprep.subr.mxu0 0.0
        %1268 = vmatpush1.msra.mxu0 0.0
        %1269 = vmatprep.subr.mxu0 0.0
        %1270 = vmatpush1.msra.mxu0 0.0
        %1271 = vmatprep.subr.mxu0 0.0
        %1272 = vmatpush1.msra.mxu0 0.0
        %1273 = vmatprep.subr.mxu0 0.0
        %1274 = vmatpush1.msra.mxu0 0.0
        %1275 = vmatprep.subr.mxu0 0.0
        %1276 = vmatpush1.msra.mxu0 0.0
        %1277 = vmatprep.subr.mxu0 0.0
        %1278 = vmatpush1.msra.mxu0 0.0
        %1279 = vmatprep.subr.mxu0 0.0
        %1280 = vmatpush2.msra.mxu0 0.0
        %1281 = vmatprep.subr.mxu0 0.0
        %1282 = vmatpush2.msra.mxu0 0.0
        %1283 = vmatprep.subr.mxu0 0.0
        %1284 = vmatpush2.msra.mxu0 0.0
        %1285 = vmatprep.subr.mxu0 0.0
        %1286 = vmatpush2.msra.mxu0 0.0
        %1287 = vmatprep.subr.mxu0 0.0
        %1288 = vmatpush2.msra.mxu0 0.0
        %1289 = vmatprep.subr.mxu0 0.0
        %1290 = vmatpush2.msra.mxu0 0.0
        %1291 = vmatprep.subr.mxu0 0.0
        %1292 = vmatpush2.msra.mxu0 0.0
        %1293 = vmatprep.subr.mxu0 0.0
        %1294 = vmatpush2.msra.mxu0 0.0
        %1295 = vmatprep.subr.mxu0 0.0
        %1296 = vmatpush2.msra.mxu0 0.0
        %1297 = vmatprep.subr.mxu0 0.0
        %1298 = vmatpush2.msra.mxu0 0.0
        %1299 = vmatprep.subr.mxu0 0.0
        %1300 = vmatpush2.msra.mxu0 0.0
        %1301 = vmatprep.subr.mxu0 0.0
        %1302 = vmatpush2.msra.mxu0 0.0
        %1303 = vmatprep.subr.mxu0 0.0
        %1304 = vmatpush2.msra.mxu0 0.0
        %1305 = vmatprep.subr.mxu0 0.0
        %1306 = vmatpush2.msra.mxu0 0.0
        %1307 = vmatprep.subr.mxu0 0.0
        %1308 = vmatpush2.msra.mxu0 0.0
        %1309 = vmatprep.subr.mxu0 0.0
        %1310 = vmatpush2.msra.mxu0 0.0
        %1311 = vmatprep.mubr.f32.mxu0 0.0
        %v1312 = vand.u32 %v1170, 4294901760
        %1313 = vmatmul.mubr.f32.gmra.mxu0 %v1312
        %v1314 = vpop.f32.mrf.mxu0
        %v1315 = vadd.f32 %v1244, %v1314
        %v1316 = vpop.f32.mrf.mxu0
        %1317 = vdwg.mxu0
        %1318 = vmatprep.subr.mxu0 0.0
        %1319 = vmatpush1.msra.mxu0 0.0
        %1320 = vmatprep.subr.mxu0 0.0
        %1321 = vmatpush1.msra.mxu0 0.0
        %1322 = vmatprep.subr.mxu0 0.0
        %1323 = vmatpush1.msra.mxu0 0.0
        %1324 = vmatprep.subr.mxu0 0.0
        %1325 = vmatpush1.msra.mxu0 0.0
        %1326 = vmatprep.subr.mxu0 0.0
        %1327 = vmatpush1.msra.mxu0 0.0
        %1328 = vmatprep.subr.mxu0 0.0
        %1329 = vmatpush1.msra.mxu0 0.0
        %1330 = vmatprep.subr.mxu0 0.0
        %1331 = vmatpush1.msra.mxu0 0.0
        %1332 = vmatprep.subr.mxu0 0.0
        %1333 = vmatpush1.msra.mxu0 0.0
        %1334 = vmatprep.subr.mxu0 0.0
        %1335 = vmatpush1.msra.mxu0 0.0
        %1336 = vmatprep.subr.mxu0 0.0
        %1337 = vmatpush1.msra.mxu0 0.0
        %1338 = vmatprep.subr.mxu0 0.0
        %1339 = vmatpush1.msra.mxu0 0.0
        %1340 = vmatprep.subr.mxu0 0.0
        %1341 = vmatpush1.msra.mxu0 0.0
        %1342 = vmatprep.subr.mxu0 0.0
        %1343 = vmatpush1.msra.mxu0 0.0
        %1344 = vmatprep.subr.mxu0 0.0
        %1345 = vmatpush1.msra.mxu0 0.0
        %1346 = vmatprep.subr.mxu0 0.0
        %1347 = vmatpush1.msra.mxu0 0.0
        %1348 = vmatprep.subr.mxu0 0.0
        %1349 = vmatpush1.msra.mxu0 0.0
        %1350 = vmatprep.subr.mxu0 0.0
        %1351 = vmatpush2.msra.mxu0 0.0
        %1352 = vmatprep.subr.mxu0 0.0
        %1353 = vmatpush2.msra.mxu0 0.0
        %1354 = vmatprep.subr.mxu0 0.0
        %1355 = vmatpush2.msra.mxu0 0.0
        %1356 = vmatprep.subr.mxu0 0.0
        %1357 = vmatpush2.msra.mxu0 0.0
        %1358 = vmatprep.subr.mxu0 0.0
        %1359 = vmatpush2.msra.mxu0 0.0
        %1360 = vmatprep.subr.mxu0 0.0
        %1361 = vmatpush2.msra.mxu0 0.0
        %1362 = vmatprep.subr.mxu0 0.0
        %1363 = vmatpush2.msra.mxu0 0.0
        %1364 = vmatprep.subr.mxu0 0.0
        %1365 = vmatpush2.msra.mxu0 0.0
        %1366 = vmatprep.subr.mxu0 0.0
        %1367 = vmatpush2.msra.mxu0 0.0
        %1368 = vmatprep.subr.mxu0 0.0
        %1369 = vmatpush2.msra.mxu0 0.0
        %1370 = vmatprep.subr.mxu0 0.0
        %1371 = vmatpush2.msra.mxu0 0.0
        %1372 = vmatprep.subr.mxu0 0.0
        %1373 = vmatpush2.msra.mxu0 0.0
        %1374 = vmatprep.subr.mxu0 0.0
        %1375 = vmatpush2.msra.mxu0 0.0
        %1376 = vmatprep.subr.mxu0 0.0
        %1377 = vmatpush2.msra.mxu0 0.0
        %1378 = vmatprep.subr.mxu0 0.0
        %1379 = vmatpush2.msra.mxu0 0.0
        %1380 = vmatprep.subr.mxu0 0.0
        %1381 = vmatpush2.msra.mxu0 0.0
        %1382 = vmatprep.mubr.f32.mxu0 0.0
        %v1383 = vand.u32 %v1170, 4294901760
        %v1384 = vsub.f32 %v1170, %v1383
        %1385 = vmatmul.mubr.f32.gmra.mxu0 %v1384
        %v1386 = vpop.f32.mrf.mxu0
        %v1387 = vadd.f32 %v1315, %v1386
        %v1388 = vpop.f32.mrf.mxu0
        %1389 = vdwg.mxu0
        %1390 = vmatprep.subr.mxu0 0.0
        %1391 = vmatpush1.msra.mxu0 0.0
        %1392 = vmatprep.subr.mxu0 0.0
        %1393 = vmatpush1.msra.mxu0 0.0
        %1394 = vmatprep.subr.mxu0 0.0
        %1395 = vmatpush1.msra.mxu0 0.0
        %1396 = vmatprep.subr.mxu0 0.0
        %1397 = vmatpush1.msra.mxu0 0.0
        %1398 = vmatprep.subr.mxu0 0.0
        %1399 = vmatpush1.msra.mxu0 0.0
        %1400 = vmatprep.subr.mxu0 0.0
        %1401 = vmatpush1.msra.mxu0 0.0
        %1402 = vmatprep.subr.mxu0 0.0
        %1403 = vmatpush1.msra.mxu0 0.0
        %1404 = vmatprep.subr.mxu0 0.0
        %1405 = vmatpush1.msra.mxu0 0.0
        %1406 = vmatprep.subr.mxu0 0.0
        %1407 = vmatpush1.msra.mxu0 0.0
        %1408 = vmatprep.subr.mxu0 0.0
        %1409 = vmatpush1.msra.mxu0 0.0
        %1410 = vmatprep.subr.mxu0 0.0
        %1411 = vmatpush1.msra.mxu0 0.0
        %1412 = vmatprep.subr.mxu0 0.0
        %1413 = vmatpush1.msra.mxu0 0.0
        %1414 = vmatprep.subr.mxu0 0.0
        %1415 = vmatpush1.msra.mxu0 1.0
        %1416 = vmatprep.subr.mxu0 0.0
        %1417 = vmatpush1.msra.mxu0 1.0
        %1418 = vmatprep.subr.mxu0 0.0
        %1419 = vmatpush1.msra.mxu0 1.0
        %1420 = vmatprep.subr.mxu0 0.0
        %1421 = vmatpush1.msra.mxu0 1.0
        %1422 = vmatprep.subr.mxu0 0.0
        %1423 = vmatpush2.msra.mxu0 0.0
        %1424 = vmatprep.subr.mxu0 0.0
        %1425 = vmatpush2.msra.mxu0 0.0
        %1426 = vmatprep.subr.mxu0 0.0
        %1427 = vmatpush2.msra.mxu0 0.0
        %1428 = vmatprep.subr.mxu0 0.0
        %1429 = vmatpush2.msra.mxu0 0.0
        %1430 = vmatprep.subr.mxu0 0.0
        %1431 = vmatpush2.msra.mxu0 0.0
        %1432 = vmatprep.subr.mxu0 0.0
        %1433 = vmatpush2.msra.mxu0 0.0
        %1434 = vmatprep.subr.mxu0 0.0
        %1435 = vmatpush2.msra.mxu0 0.0
        %1436 = vmatprep.subr.mxu0 0.0
        %1437 = vmatpush2.msra.mxu0 0.0
        %1438 = vmatprep.subr.mxu0 0.0
        %1439 = vmatpush2.msra.mxu0 0.0
        %1440 = vmatprep.subr.mxu0 0.0
        %1441 = vmatpush2.msra.mxu0 0.0
        %1442 = vmatprep.subr.mxu0 0.0
        %1443 = vmatpush2.msra.mxu0 0.0
        %1444 = vmatprep.subr.mxu0 0.0
        %1445 = vmatpush2.msra.mxu0 0.0
        %1446 = vmatprep.subr.mxu0 0.0
        %1447 = vmatpush2.msra.mxu0 0.0
        %1448 = vmatprep.subr.mxu0 0.0
        %1449 = vmatpush2.msra.mxu0 0.0
        %1450 = vmatprep.subr.mxu0 0.0
        %1451 = vmatpush2.msra.mxu0 0.0
        %1452 = vmatprep.subr.mxu0 0.0
        %1453 = vmatpush2.msra.mxu0 0.0
        %1454 = vmatprep.mubr.f32.mxu0 0.0
        %v1455 = vand.u32 %v1170, 4294901760
        %v1456 = vsub.f32 %v1170, %v1455
        %v1457 = vand.u32 %v1456, 4294901760
        %1458 = vmatmul.mubr.f32.gmra.mxu0 %v1457
        %v1459 = vpop.f32.mrf.mxu0
        %v1460 = vadd.f32 %v1387, %v1459
        %v1461 = vpop.f32.mrf.mxu0
        %1462 = vdwg.mxu0
        %1463 = vmatprep.subr.mxu0 0.0
        %1464 = vmatpush1.msra.mxu0 0.0
        %1465 = vmatprep.subr.mxu0 0.0
        %1466 = vmatpush1.msra.mxu0 0.0
        %1467 = vmatprep.subr.mxu0 0.0
        %1468 = vmatpush1.msra.mxu0 0.0
        %1469 = vmatprep.subr.mxu0 0.0
        %1470 = vmatpush1.msra.mxu0 0.0
        %1471 = vmatprep.subr.mxu0 0.0
        %1472 = vmatpush1.msra.mxu0 0.0
        %1473 = vmatprep.subr.mxu0 0.0
        %1474 = vmatpush1.msra.mxu0 0.0
        %1475 = vmatprep.subr.mxu0 0.0
        %1476 = vmatpush1.msra.mxu0 0.0
        %1477 = vmatprep.subr.mxu0 0.0
        %1478 = vmatpush1.msra.mxu0 0.0
        %1479 = vmatprep.subr.mxu0 0.0
        %1480 = vmatpush1.msra.mxu0 0.0
        %1481 = vmatprep.subr.mxu0 0.0
        %1482 = vmatpush1.msra.mxu0 0.0
        %1483 = vmatprep.subr.mxu0 0.0
        %1484 = vmatpush1.msra.mxu0 0.0
        %1485 = vmatprep.subr.mxu0 0.0
        %1486 = vmatpush1.msra.mxu0 0.0
        %1487 = vmatprep.subr.mxu0 0.0
        %1488 = vmatpush1.msra.mxu0 0.0
        %1489 = vmatprep.subr.mxu0 0.0
        %1490 = vmatpush1.msra.mxu0 0.0
        %1491 = vmatprep.subr.mxu0 0.0
        %1492 = vmatpush1.msra.mxu0 0.0
        %1493 = vmatprep.subr.mxu0 0.0
        %1494 = vmatpush1.msra.mxu0 0.0
        %1495 = vmatprep.subr.mxu0 0.0
        %1496 = vmatpush2.msra.mxu0 0.0
        %1497 = vmatprep.subr.mxu0 0.0
        %1498 = vmatpush2.msra.mxu0 0.0
        %1499 = vmatprep.subr.mxu0 0.0
        %1500 = vmatpush2.msra.mxu0 0.0
        %1501 = vmatprep.subr.mxu0 0.0
        %1502 = vmatpush2.msra.mxu0 0.0
        %1503 = vmatprep.subr.mxu0 0.0
        %1504 = vmatpush2.msra.mxu0 0.0
        %1505 = vmatprep.subr.mxu0 0.0
        %1506 = vmatpush2.msra.mxu0 0.0
        %1507 = vmatprep.subr.mxu0 0.0
        %1508 = vmatpush2.msra.mxu0 0.0
        %1509 = vmatprep.subr.mxu0 0.0
        %1510 = vmatpush2.msra.mxu0 0.0
        %1511 = vmatprep.subr.mxu0 0.0
        %1512 = vmatpush2.msra.mxu0 0.0
        %1513 = vmatprep.subr.mxu0 0.0
        %1514 = vmatpush2.msra.mxu0 0.0
        %1515 = vmatprep.subr.mxu0 0.0
        %1516 = vmatpush2.msra.mxu0 0.0
        %1517 = vmatprep.subr.mxu0 0.0
        %1518 = vmatpush2.msra.mxu0 0.0
        %1519 = vmatprep.subr.mxu0 0.0
        %1520 = vmatpush2.msra.mxu0 0.0
        %1521 = vmatprep.subr.mxu0 0.0
        %1522 = vmatpush2.msra.mxu0 0.0
        %1523 = vmatprep.subr.mxu0 0.0
        %1524 = vmatpush2.msra.mxu0 0.0
        %1525 = vmatprep.subr.mxu0 0.0
        %1526 = vmatpush2.msra.mxu0 0.0
        %1527 = vmatprep.mubr.f32.mxu0 0.0
        %v1528 = vand.u32 %v1170, 4294901760
        %1529 = vmatmul.mubr.f32.gmra.mxu0 %v1528
        %v1530 = vpop.f32.mrf.mxu0
        %v1531 = vadd.f32 %v1460, %v1530
        %v1532 = vpop.f32.mrf.mxu0
        %1533 = vdwg.mxu0
        %1534 = vmatprep.subr.mxu0 0.0
        %1535 = vmatpush1.msra.mxu0 0.0
        %1536 = vmatprep.subr.mxu0 0.0
        %1537 = vmatpush1.msra.mxu0 0.0
        %1538 = vmatprep.subr.mxu0 0.0
        %1539 = vmatpush1.msra.mxu0 0.0
        %1540 = vmatprep.subr.mxu0 0.0
        %1541 = vmatpush1.msra.mxu0 0.0
        %1542 = vmatprep.subr.mxu0 0.0
        %1543 = vmatpush1.msra.mxu0 0.0
        %1544 = vmatprep.subr.mxu0 0.0
        %1545 = vmatpush1.msra.mxu0 0.0
        %1546 = vmatprep.subr.mxu0 0.0
        %1547 = vmatpush1.msra.mxu0 0.0
        %1548 = vmatprep.subr.mxu0 0.0
        %1549 = vmatpush1.msra.mxu0 0.0
        %1550 = vmatprep.subr.mxu0 0.0
        %1551 = vmatpush1.msra.mxu0 0.0
        %1552 = vmatprep.subr.mxu0 0.0
        %1553 = vmatpush1.msra.mxu0 0.0
        %1554 = vmatprep.subr.mxu0 0.0
        %1555 = vmatpush1.msra.mxu0 0.0
        %1556 = vmatprep.subr.mxu0 0.0
        %1557 = vmatpush1.msra.mxu0 0.0
        %1558 = vmatprep.subr.mxu0 0.0
        %1559 = vmatpush1.msra.mxu0 1.0
        %1560 = vmatprep.subr.mxu0 0.0
        %1561 = vmatpush1.msra.mxu0 1.0
        %1562 = vmatprep.subr.mxu0 0.0
        %1563 = vmatpush1.msra.mxu0 1.0
        %1564 = vmatprep.subr.mxu0 0.0
        %1565 = vmatpush1.msra.mxu0 1.0
        %1566 = vmatprep.subr.mxu0 0.0
        %1567 = vmatpush2.msra.mxu0 0.0
        %1568 = vmatprep.subr.mxu0 0.0
        %1569 = vmatpush2.msra.mxu0 0.0
        %1570 = vmatprep.subr.mxu0 0.0
        %1571 = vmatpush2.msra.mxu0 0.0
        %1572 = vmatprep.subr.mxu0 0.0
        %1573 = vmatpush2.msra.mxu0 0.0
        %1574 = vmatprep.subr.mxu0 0.0
        %1575 = vmatpush2.msra.mxu0 0.0
        %1576 = vmatprep.subr.mxu0 0.0
        %1577 = vmatpush2.msra.mxu0 0.0
        %1578 = vmatprep.subr.mxu0 0.0
        %1579 = vmatpush2.msra.mxu0 0.0
        %1580 = vmatprep.subr.mxu0 0.0
        %1581 = vmatpush2.msra.mxu0 0.0
        %1582 = vmatprep.subr.mxu0 0.0
        %1583 = vmatpush2.msra.mxu0 0.0
        %1584 = vmatprep.subr.mxu0 0.0
        %1585 = vmatpush2.msra.mxu0 0.0
        %1586 = vmatprep.subr.mxu0 0.0
        %1587 = vmatpush2.msra.mxu0 0.0
        %1588 = vmatprep.subr.mxu0 0.0
        %1589 = vmatpush2.msra.mxu0 0.0
        %1590 = vmatprep.subr.mxu0 0.0
        %1591 = vmatpush2.msra.mxu0 0.0
        %1592 = vmatprep.subr.mxu0 0.0
        %1593 = vmatpush2.msra.mxu0 0.0
        %1594 = vmatprep.subr.mxu0 0.0
        %1595 = vmatpush2.msra.mxu0 0.0
        %1596 = vmatprep.subr.mxu0 0.0
        %1597 = vmatpush2.msra.mxu0 0.0
        %1598 = vmatprep.mubr.f32.mxu0 0.0
        %v1599 = vand.u32 %v1170, 4294901760
        %1600 = vmatmul.mubr.f32.gmra.mxu0 %v1599
        %v1601 = vpop.f32.mrf.mxu0
        %v1602 = vadd.f32 %v1531, %v1601
        %v1603 = vpop.f32.mrf.mxu0
        %1604 = vdwg.mxu0
        %v1605 = vmul.f32 %v1166, %v1602
        %v1606 = vmax.f32 %v1605, 1e-12
        %v1607 = vrsqrt.pop %v1606
        %v1608 = vmul.f32 %v730, %v1607
        %v1609 = vsub.f32 1.0, %v1608
        %v1610 = vmax.f32 %v1609, 0.0
        %v1611 = vld [vmem:[%s277] sm:$0xff]
        %v1612 = vsub.f32 1.0, %v1611
        %v1613 = vmul.f32 %v1608, %v1608
        %1615 = vset.pattern.permute.xlu0 0
        %1616 = vperm.xlu0 %1615, %v1612
        %v1617 = vpop.permute.xlu0 %1616
        %v1619 = vmul.f32 %v1617, %v1613
        %v1620 = vmul.f32 %v1610, %v1610
        %1622 = vset.pattern.permute.xlu0 0
        %1623 = vperm.xlu0 %1622, %v1611
        %v1624 = vpop.permute.xlu0 %1623
        %v1626 = vmul.f32 %v1624, %v1620
        %v1627 = vadd.f32 %v1619, %v1626
        %s1628 = sadd.s32 %s284, 1
        %s1629 = smul.u32 %s1628, 8
        %p1630 = scmp.le.s32.totalorder %s1629, 10
        // Predicated region
        $region41: #{tpu_custom_call.1} parent=31 // pred_check
          %p1631 = pneg %p1630
        $region42: #{tpu_custom_call.1} parent=31 // pred_check_branch
          %1633 = sbr.rel (%p1631) target = $region44
        $region43: #{tpu_custom_call.1} parent=31 // pred_region
          %v1634 = vld [vmem:[%s283] sm:$0x1]
          %1635 = vadd.xlane.f32.xlu0 %v1627
          %v1636 = vpop.xlane.xlu0 %1635
          %v1637 = vrot.slane %v1636, 4
          %v1638 = vadd.f32 %v1636, %v1637
          %v1639 = vrot.slane %v1638, 2
          %v1640 = vadd.f32 %v1638, %v1639
          %v1641 = vrot.slane %v1640, 1
          %v1642 = vadd.f32 %v1640, %v1641
          %s1643 = vtos %v1642
          %v1644 = vstv %s1643
          %v1645 = vadd.f32 %v1634, %v1644
          %vm1646 = vcmask 0
          %1647 = vst.msk [vmem:[%s283] sm:$0x1] %vm1646, %v1645
        $region44: #{tpu_custom_call.1} parent=31 // pred_fallthru
          _
        %p1648 = scmp.gt.s32.totalorder %s1629, 10
        // Predicated region
        $region45: #{tpu_custom_call.1} parent=31 // pred_check
          %p1649 = pneg %p1648
        $region46: #{tpu_custom_call.1} parent=31 // pred_check_branch
          %1651 = sbr.rel (%p1649) target = $region48
        $region47: #{tpu_custom_call.1} parent=31 // pred_region
          %s1652 = smul.u32 %s284, 8
          %v1653 = vlaneseq
          %v1654 = vshrl.u32 %v1653, 7
          %v1655 = vstv %s1652
          %v1656 = vadd.s32 %v1655, %v1654
          %v1657 = vld [vmem:[%s283] sm:$0x1]
          %vm1658 = vcmp.lt.s32.totalorder %v1656, 10
          %v1659 = vsel %vm1658, %v1627, 0.0
          %1660 = vadd.xlane.f32.xlu0 %v1659
          %v1661 = vpop.xlane.xlu0 %1660
          %v1662 = vrot.slane %v1661, 4
          %v1663 = vadd.f32 %v1661, %v1662
          %v1664 = vrot.slane %v1663, 2
          %v1665 = vadd.f32 %v1663, %v1664
          %v1666 = vrot.slane %v1665, 1
          %v1667 = vadd.f32 %v1665, %v1666
          %s1668 = vtos %v1667
          %v1669 = vstv %s1668
          %v1670 = vadd.f32 %v1657, %v1669
          %vm1671 = vcmask 0
          %1672 = vst.msk [vmem:[%s283] sm:$0x1] %vm1671, %v1670
        $region48: #{tpu_custom_call.1} parent=31 // pred_fallthru
          _
        %p1673 = scmp.lt.s32.totalorder %s21, 1
        %s1674 = scalar_select %p1673, %s21, 1
        %s1675 = scalar_lea.vmem %s3, %s1674
        // Predicated region
        $region49: #{tpu_custom_call.1} parent=31 // pred_check
          %p1676 = pneg %p143
        $region50: #{tpu_custom_call.1} parent=31 // pred_check_branch
          %1678 = sbr.rel (%p1676) target = $region52
        $region51: #{tpu_custom_call.1} parent=31 // pred_region
          _
        $region52: #{tpu_custom_call.1} parent=31 // pred_fallthru
          _
      $region32: #{tpu_custom_call.1} parent=5 // pred_fallthru
        _
      %p1679 = scmp.le.s32.totalorder 2, %s12
      // Predicated region
      $region53: #{tpu_custom_call.1} parent=5 // pred_check
        %p1680 = pneg %p1679
      $region54: #{tpu_custom_call.1} parent=5 // pred_check_branch
        %1682 = sbr.rel (%p1680) target = $region56
      $region55: #{tpu_custom_call.1} parent=5 // pred_region
        %s1683 = ssub.s32 %s12, 2
        // Predicated region
        $region57: #{tpu_custom_call.1} parent=55 // pred_check
          %p1684 = pneg %p149
        $region58: #{tpu_custom_call.1} parent=55 // pred_check_branch
          %1686 = sbr.rel (%p1684) target = $region60
        $region59: #{tpu_custom_call.1} parent=55 // pred_region
          %p1687 = scmp.lt.s32.totalorder %s23, 1
          %s1688 = scalar_select %p1687, %s23, 1
          %s1689 = scalar_lea.vmem %s3, %s1688
        $region60: #{tpu_custom_call.1} parent=55 // pred_fallthru
          _
      $region56: #{tpu_custom_call.1} parent=5 // pred_fallthru
        _
    $region6: #{tpu_custom_call.1} parent=1 // loop_footer
      %s16 = sadd.s32 1, %s12
    $region7: #{tpu_custom_call.1} parent=1 // loop_footer_branch
      %11 = sbr.rel target = $region3
    $region8: #{tpu_custom_call.1} parent=1 // loop_exit
      _
    %1690 = vsyncpa [#allocation3], 1
    %s1691 = scalar_lea.sflag [#allocation3], 1
    %1692 = vsyncpa %s1691, 1

</llo_original>
